<compile_context>
chip_gen: v6e
topology: v6e:2x2x1
jax: 0.10.0
libtpu: 0.0.40
codegen_flags: <defaults>
</compile_context>

<pallas_src>
import functools

import jax
import jax.numpy as jnp
from jax import lax
from jax.experimental import pallas as pl
from jax.experimental.pallas import tpu as pltpu


def _round_up(x, m):
    return (x + m - 1) // m * m


# ----------------------------------------------------------------------------- kernel
def _lstm_kernel(x_ref, w_hh_ref, w_ih_ref, b_ref, w_out_ref, b_out_ref, out_ref, *,
                 hidden_pad, seq_len, unroll_limit=16):
    """x_ref: (TB, T) f32; w_hh_ref: (Hp, 4Hp) bf16; w_ih_ref/b_ref: (1, 4Hp) f32;
    w_out_ref: (1, Hp) f32; b_out_ref: (1,) f32 in SMEM; out_ref: (TB, 128) f32."""
    Hp = hidden_pad
    TB = out_ref.shape[0]

    def cell(x_col, h, c):
        # x_col: (TB, 1) f32 — the whole input contribution is a rank-1 broadcast.
        h_mm = h.astype(w_hh_ref.dtype)       # bf16 MXU operands (f32 accumulation)

        def pre(k):
            # Gate-wise pre-activation: static ref slices of W_hh/W_ih/b (free),
            # one (TB, Hp) matmul per gate — keeps the live set small (rec #2).
            return (x_col * w_ih_ref[:, k * Hp:(k + 1) * Hp]
                    + b_ref[:, k * Hp:(k + 1) * Hp]
                    + jnp.dot(h_mm, w_hh_ref[:, k * Hp:(k + 1) * Hp],
                              preferred_element_type=jnp.float32))

        i = jax.nn.sigmoid(pre(0))            # PyTorch gate order [i, f, g, o]
        f = jax.nn.sigmoid(pre(1))
        g = jnp.tanh(pre(2))
        o = jax.nn.sigmoid(pre(3))
        c_new = f * c + i * g
        h_new = o * jnp.tanh(c_new)
        return h_new, c_new

    h = jnp.zeros((TB, Hp), jnp.float32)      # loop-carried state (vregs, never VMEM)
    c = jnp.zeros((TB, Hp), jnp.float32)

    if seq_len <= unroll_limit:
        # Short sequences: full static unroll (LLO scheduler visibility, static slices).
        for t in range(seq_len):
            h, c = cell(x_ref[:, t:t + 1], h, c)
    else:
        # Longer sequences: partial unroll keeps vreg pressure & compile time bounded.
        def body(t, hc):
            h, c = hc
            return cell(x_ref[:, pl.ds(t, 1)], h, c)
        h, c = lax.fori_loop(0, seq_len, body, (h, c), unroll=4)

    # Final Linear(H, 1): VPU multiply + lane reduction (no N=1 MXU matmul), f32.
    val = jnp.sum(h * w_out_ref[...], axis=-1, keepdims=True) + b_out_ref[0]  # (TB, 1)
    # Lane-dense output slab (no masked partial stores); wrapper slices [:, :1].
    out_ref[...] = jnp.broadcast_to(val, out_ref.shape)


# ----------------------------------------------------------------------------- wrapper
def lstm_model_forward(x, params):
    """x: (B, T) float32.  Returns (B, 1) float32 == LSTMModel(x.unsqueeze(-1))."""
    w_ih_p, w_hh_p, b_p, w_out_p, b_out_p = params
    B, T = x.shape
    Hp = w_hh_p.shape[0]                      # padded hidden size (128)

    # Batch tiling: pad to sublane multiple, cap tile at 64 rows (vreg pressure,
    # rec #2c) which also yields >=2 tiles for mid/large batches (v7x 2-TC, rec #5).
    TB = min(_round_up(B, 8), 64)
    Bp = _round_up(B, TB)
    if Bp != B:
        x = jnp.zeros((Bp, T), x.dtype).at[:B].set(x)

    kernel = functools.partial(_lstm_kernel, hidden_pad=Hp, seq_len=T)
    out_padded = pl.pallas_call(
        kernel,
        out_shape=jax.ShapeDtypeStruct((Bp, 128), jnp.float32),
        grid_spec=pltpu.PrefetchScalarGridSpec(
            num_scalar_prefetch=0,
            grid=(Bp // TB,),
            in_specs=[
                pl.BlockSpec((TB, T), lambda i: (i, 0)),        # x (batch-tiled, tiny)
                pl.BlockSpec((Hp, 4 * Hp), lambda i: (0, 0)),   # W_hh (bf16, resident)
                pl.BlockSpec((1, 4 * Hp), lambda i: (0, 0)),    # W_ih row (f32)
                pl.BlockSpec((1, 4 * Hp), lambda i: (0, 0)),    # b_ih + b_hh row (f32)
                pl.BlockSpec((1, Hp), lambda i: (0, 0)),        # W_out row (f32)
                pl.BlockSpec(memory_space=pltpu.MemorySpace.SMEM),  # b_out scalar
            ],
            out_specs=pl.BlockSpec((TB, 128), lambda i: (i, 0)),
        ),
        compiler_params=pltpu.CompilerParams(
            dimension_semantics=("parallel",)),   # batch tiles are independent
    )(x, w_hh_p, w_ih_p, b_p, w_out_p, b_out_p)

    return out_padded[:B, :1]


# ----------------------------------------------------------------------------- params
def init_pt_params(key, input_size=1, hidden_size=64):
    """Deterministic PyTorch-style uniform(-1/sqrt(H), 1/sqrt(H)) init, PyTorch shapes."""
    H = hidden_size
    k = 1.0 / jnp.sqrt(jnp.float32(H))
    ks = jax.random.split(key, 6)
    w_ih = jax.random.uniform(ks[0], (4 * H, input_size), jnp.float32, -k, k)
    w_hh = jax.random.uniform(ks[1], (4 * H, H), jnp.float32, -k, k)
    b_ih = jax.random.uniform(ks[2], (4 * H,), jnp.float32, -k, k)
    b_hh = jax.random.uniform(ks[3], (4 * H,), jnp.float32, -k, k)
    w_lin = jax.random.uniform(ks[4], (1, H), jnp.float32, -k, k)
    b_lin = jax.random.uniform(ks[5], (1,), jnp.float32, -k, k)
    return w_ih, w_hh, b_ih, b_hh, w_lin, b_lin


def prepare_params(pt_params, hidden_size=64, hidden_pad=128, matmul_dtype=jnp.bfloat16):
    """PyTorch-shaped params -> kernel layout, hidden dim zero-padded to hidden_pad.

    Padded-lane analysis: padded gate columns of W_ih, b and W_hh are zero, so padded
    gate pre-activations are 0 -> i=f=o=0.5, g=0 there -> c_pad and h_pad stay 0 for
    all t (starting from 0).  Padded rows of W_hh and padded lanes of W_out are zero,
    so padded lanes never leak into real outputs.  Zeros are exact in bf16."""
    w_ih, w_hh, b_ih, b_hh, w_lin, b_lin = pt_params
    H, Hp = hidden_size, hidden_pad
    assert w_ih.shape[1] == 1, "kernel specialises input_size=1 (as in the PyTorch model)"

    def pad_gate_row(v):                               # (4H,) -> (1, 4Hp), per-gate pad
        out = jnp.zeros((4 * Hp,), jnp.float32)
        for k in range(4):
            out = out.at[k * Hp:k * Hp + H].set(v[k * H:(k + 1) * H])
        return out.reshape(1, 4 * Hp)

    w_ih_p = pad_gate_row(w_ih[:, 0])                  # (1, 4Hp) f32
    b_p = pad_gate_row(b_ih + b_hh)                    # (1, 4Hp) f32

    w_hh_t = w_hh.T                                    # (H, 4H) input-major
    w_hh_p = jnp.zeros((Hp, 4 * Hp), jnp.float32)
    for k in range(4):
        w_hh_p = w_hh_p.at[:H, k * Hp:k * Hp + H].set(w_hh_t[:, k * H:(k + 1) * H])
    w_hh_p = w_hh_p.astype(matmul_dtype)               # bf16 MXU operands (rec #4)

    w_out_p = jnp.zeros((1, Hp), jnp.float32).at[:, :H].set(w_lin)   # (1, Hp) f32
    b_out_p = b_lin.reshape(1).astype(jnp.float32)                   # (1,) f32 -> SMEM
    return w_ih_p, w_hh_p, b_p, w_out_p, b_out_p


# ----------------------------------------------------------------------------- reference
def reference_forward(x, pt_params, hidden_size):
    """Pure-JAX f32 reference matching nn.LSTM(batch_first=True) + nn.Linear."""
    w_ih, w_hh, b_ih, b_hh, w_lin, b_lin = pt_params
    B, T = x.shape
    H = hidden_size
    h = jnp.zeros((B, H), jnp.float32)
    c = jnp.zeros((B, H), jnp.float32)
    for t in range(T):
        x_t = x[:, t:t + 1]                                          # (B, 1)
        gates = x_t @ w_ih.T + h @ w_hh.T + b_ih + b_hh              # (B, 4H)
        i = jax.nn.sigmoid(gates[:, 0 * H:1 * H])
        f = jax.nn.sigmoid(gates[:, 1 * H:2 * H])
        g = jnp.tanh(gates[:, 2 * H:3 * H])
        o = jax.nn.sigmoid(gates[:, 3 * H:4 * H])
        c = f * c + i * g
        h = o * jnp.tanh(c)
    return h @ w_lin.T + b_lin


if __name__ == "__main__":
    B, T, H = 2, 8, 64
    key = jax.random.PRNGKey(0)
    k_x, k_p = jax.random.split(key)
    x = jax.random.normal(k_x, (B, T), jnp.float32)

    pt_params = init_pt_params(k_p, input_size=1, hidden_size=H)
    params = prepare_params(pt_params, hidden_size=H, hidden_pad=128)

    out = lstm_model_forward(x, params)
    out = jax.block_until_ready(out)

    ref = reference_forward(x, pt_params, H)
    assert out.shape == (B, 1), out.shape
    # bf16 MXU operands (f32 accumulate / f32 elementwise) -> tolerance widened vs f32 ref.
    assert jnp.allclose(out, ref, atol=2e-2, rtol=2e-2), (out, ref)

    print("KERNEL_OK")
</pallas_src>

<mosaic_0001>
module attributes {stable_mosaic.version = 11 : i64} {
  func.func @_lstm_kernel(%arg0: i32, %arg1: memref<8x8xf32, #tpu.memory_space<vmem>>, %arg2: memref<128x512xbf16, #tpu.memory_space<vmem>>, %arg3: memref<1x512xf32, #tpu.memory_space<vmem>>, %arg4: memref<1x512xf32, #tpu.memory_space<vmem>>, %arg5: memref<1x128xf32, #tpu.memory_space<vmem>>, %arg6: memref<1xf32, #tpu.memory_space<smem>>, %arg7: memref<8x128xf32, #tpu.memory_space<vmem>>) attributes {dimension_semantics = [#tpu.dimension_semantics<parallel>], iteration_bounds = array<i64: 1>, scalar_prefetch = 0 : i64, scratch_operands = 0 : i64, tpu.core_type = #tpu.core_type<tc>, window_params = [{transform_indices = @transform_0, window_bounds = array<i64: 8, 8>}, {pipeline_mode = #tpu.pipeline_mode<synchronous>, transform_indices = @transform_1, window_bounds = array<i64: 128, 512>}, {pipeline_mode = #tpu.pipeline_mode<synchronous>, transform_indices = @transform_2, window_bounds = array<i64: 1, 512>}, {pipeline_mode = #tpu.pipeline_mode<synchronous>, transform_indices = @transform_3, window_bounds = array<i64: 1, 512>}, {pipeline_mode = #tpu.pipeline_mode<synchronous>, transform_indices = @transform_4, window_bounds = array<i64: 1, 128>}, {transform_indices = @transform_5, window_bounds = array<i64: 1>}, {transform_indices = @transform_6, window_bounds = array<i64: 8, 128>}]} {
    %cst = arith.constant 0.000000e+00 : f32
    %0 = vector.broadcast %cst : f32 to vector<8x128xf32>
    %cst_0 = arith.constant 0.000000e+00 : f32
    %1 = vector.broadcast %cst_0 : f32 to vector<8x128xf32>
    %c0 = arith.constant 0 : index
    %c0_1 = arith.constant 0 : index
    %2 = vector.load %arg1[%c0, %c0_1] : memref<8x8xf32, #tpu.memory_space<vmem>>, vector<8x1xf32>
    %3 = arith.truncf %0 : vector<8x128xf32> to vector<8x128xbf16>
    %c0_2 = arith.constant 0 : index
    %c0_3 = arith.constant 0 : index
    %4 = vector.load %arg3[%c0_2, %c0_3] : memref<1x512xf32, #tpu.memory_space<vmem>>, vector<1x128xf32>
    %5 = vector.broadcast %2 : vector<8x1xf32> to vector<8x128xf32>
    %6 = vector.broadcast %4 : vector<1x128xf32> to vector<8x128xf32>
    %7 = arith.mulf %5, %6 : vector<8x128xf32>
    %c0_4 = arith.constant 0 : index
    %c0_5 = arith.constant 0 : index
    %8 = vector.load %arg4[%c0_4, %c0_5] : memref<1x512xf32, #tpu.memory_space<vmem>>, vector<1x128xf32>
    %9 = vector.broadcast %8 : vector<1x128xf32> to vector<8x128xf32>
    %10 = arith.addf %7, %9 : vector<8x128xf32>
    %c0_6 = arith.constant 0 : index
    %c0_7 = arith.constant 0 : index
    %11 = vector.load %arg2[%c0_6, %c0_7] : memref<128x512xbf16, #tpu.memory_space<vmem>>, vector<128x128xbf16>
    %cst_8 = arith.constant dense<0.000000e+00> : vector<8x128xf32>
    %12 = tpu.matmul %3, %11, %cst_8 {dimension_numbers = #tpu.dot_dimension_numbers<[1], [0], [0], [1], [0, 0, 1, 1], [], []>} : vector<8x128xbf16>, vector<128x128xbf16>, vector<8x128xf32> -> vector<8x128xf32>
    %13 = arith.addf %10, %12 : vector<8x128xf32>
    %14 = arith.negf %13 : vector<8x128xf32>
    %15 = math.exp %14 : vector<8x128xf32>
    %cst_9 = arith.constant 1.000000e+00 : f32
    %16 = vector.broadcast %cst_9 : f32 to vector<8x128xf32>
    %17 = arith.addf %16, %15 : vector<8x128xf32>
    %18 = arith.divf %16, %17 : vector<8x128xf32>
    %c0_10 = arith.constant 0 : index
    %c128 = arith.constant 128 : index
    %19 = vector.load %arg3[%c0_10, %c128] : memref<1x512xf32, #tpu.memory_space<vmem>>, vector<1x128xf32>
    %20 = vector.broadcast %2 : vector<8x1xf32> to vector<8x128xf32>
    %21 = vector.broadcast %19 : vector<1x128xf32> to vector<8x128xf32>
    %22 = arith.mulf %20, %21 : vector<8x128xf32>
    %c0_11 = arith.constant 0 : index
    %c128_12 = arith.constant 128 : index
    %23 = vector.load %arg4[%c0_11, %c128_12] : memref<1x512xf32, #tpu.memory_space<vmem>>, vector<1x128xf32>
    %24 = vector.broadcast %23 : vector<1x128xf32> to vector<8x128xf32>
    %25 = arith.addf %22, %24 : vector<8x128xf32>
    %c0_13 = arith.constant 0 : index
    %c128_14 = arith.constant 128 : index
    %26 = vector.load %arg2[%c0_13, %c128_14] : memref<128x512xbf16, #tpu.memory_space<vmem>>, vector<128x128xbf16>
    %cst_15 = arith.constant dense<0.000000e+00> : vector<8x128xf32>
    %27 = tpu.matmul %3, %26, %cst_15 {dimension_numbers = #tpu.dot_dimension_numbers<[1], [0], [0], [1], [0, 0, 1, 1], [], []>} : vector<8x128xbf16>, vector<128x128xbf16>, vector<8x128xf32> -> vector<8x128xf32>
    %28 = arith.addf %25, %27 : vector<8x128xf32>
    %29 = arith.negf %28 : vector<8x128xf32>
    %30 = math.exp %29 : vector<8x128xf32>
    %cst_16 = arith.constant 1.000000e+00 : f32
    %31 = vector.broadcast %cst_16 : f32 to vector<8x128xf32>
    %32 = arith.addf %31, %30 : vector<8x128xf32>
    %33 = arith.divf %31, %32 : vector<8x128xf32>
    %c0_17 = arith.constant 0 : index
    %c256 = arith.constant 256 : index
    %34 = vector.load %arg3[%c0_17, %c256] : memref<1x512xf32, #tpu.memory_space<vmem>>, vector<1x128xf32>
    %35 = vector.broadcast %2 : vector<8x1xf32> to vector<8x128xf32>
    %36 = vector.broadcast %34 : vector<1x128xf32> to vector<8x128xf32>
    %37 = arith.mulf %35, %36 : vector<8x128xf32>
    %c0_18 = arith.constant 0 : index
    %c256_19 = arith.constant 256 : index
    %38 = vector.load %arg4[%c0_18, %c256_19] : memref<1x512xf32, #tpu.memory_space<vmem>>, vector<1x128xf32>
    %39 = vector.broadcast %38 : vector<1x128xf32> to vector<8x128xf32>
    %40 = arith.addf %37, %39 : vector<8x128xf32>
    %c0_20 = arith.constant 0 : index
    %c256_21 = arith.constant 256 : index
    %41 = vector.load %arg2[%c0_20, %c256_21] : memref<128x512xbf16, #tpu.memory_space<vmem>>, vector<128x128xbf16>
    %cst_22 = arith.constant dense<0.000000e+00> : vector<8x128xf32>
    %42 = tpu.matmul %3, %41, %cst_22 {dimension_numbers = #tpu.dot_dimension_numbers<[1], [0], [0], [1], [0, 0, 1, 1], [], []>} : vector<8x128xbf16>, vector<128x128xbf16>, vector<8x128xf32> -> vector<8x128xf32>
    %43 = arith.addf %40, %42 : vector<8x128xf32>
    %44 = math.tanh %43 : vector<8x128xf32>
    %c0_23 = arith.constant 0 : index
    %c384 = arith.constant 384 : index
    %45 = vector.load %arg3[%c0_23, %c384] : memref<1x512xf32, #tpu.memory_space<vmem>>, vector<1x128xf32>
    %46 = vector.broadcast %2 : vector<8x1xf32> to vector<8x128xf32>
    %47 = vector.broadcast %45 : vector<1x128xf32> to vector<8x128xf32>
    %48 = arith.mulf %46, %47 : vector<8x128xf32>
    %c0_24 = arith.constant 0 : index
    %c384_25 = arith.constant 384 : index
    %49 = vector.load %arg4[%c0_24, %c384_25] : memref<1x512xf32, #tpu.memory_space<vmem>>, vector<1x128xf32>
    %50 = vector.broadcast %49 : vector<1x128xf32> to vector<8x128xf32>
    %51 = arith.addf %48, %50 : vector<8x128xf32>
    %c0_26 = arith.constant 0 : index
    %c384_27 = arith.constant 384 : index
    %52 = vector.load %arg2[%c0_26, %c384_27] : memref<128x512xbf16, #tpu.memory_space<vmem>>, vector<128x128xbf16>
    %cst_28 = arith.constant dense<0.000000e+00> : vector<8x128xf32>
    %53 = tpu.matmul %3, %52, %cst_28 {dimension_numbers = #tpu.dot_dimension_numbers<[1], [0], [0], [1], [0, 0, 1, 1], [], []>} : vector<8x128xbf16>, vector<128x128xbf16>, vector<8x128xf32> -> vector<8x128xf32>
    %54 = arith.addf %51, %53 : vector<8x128xf32>
    %55 = arith.negf %54 : vector<8x128xf32>
    %56 = math.exp %55 : vector<8x128xf32>
    %cst_29 = arith.constant 1.000000e+00 : f32
    %57 = vector.broadcast %cst_29 : f32 to vector<8x128xf32>
    %58 = arith.addf %57, %56 : vector<8x128xf32>
    %59 = arith.divf %57, %58 : vector<8x128xf32>
    %60 = arith.mulf %33, %1 : vector<8x128xf32>
    %61 = arith.mulf %18, %44 : vector<8x128xf32>
    %62 = arith.addf %60, %61 : vector<8x128xf32>
    %63 = math.tanh %62 : vector<8x128xf32>
    %64 = arith.mulf %59, %63 : vector<8x128xf32>
    %c0_30 = arith.constant 0 : index
    %c1 = arith.constant 1 : index
    %65 = vector.load %arg1[%c0_30, %c1] : memref<8x8xf32, #tpu.memory_space<vmem>>, vector<8x1xf32>
    %66 = arith.truncf %64 : vector<8x128xf32> to vector<8x128xbf16>
    %c0_31 = arith.constant 0 : index
    %c0_32 = arith.constant 0 : index
    %67 = vector.load %arg3[%c0_31, %c0_32] : memref<1x512xf32, #tpu.memory_space<vmem>>, vector<1x128xf32>
    %68 = vector.broadcast %65 : vector<8x1xf32> to vector<8x128xf32>
    %69 = vector.broadcast %67 : vector<1x128xf32> to vector<8x128xf32>
    %70 = arith.mulf %68, %69 : vector<8x128xf32>
    %c0_33 = arith.constant 0 : index
    %c0_34 = arith.constant 0 : index
    %71 = vector.load %arg4[%c0_33, %c0_34] : memref<1x512xf32, #tpu.memory_space<vmem>>, vector<1x128xf32>
    %72 = vector.broadcast %71 : vector<1x128xf32> to vector<8x128xf32>
    %73 = arith.addf %70, %72 : vector<8x128xf32>
    %c0_35 = arith.constant 0 : index
    %c0_36 = arith.constant 0 : index
    %74 = vector.load %arg2[%c0_35, %c0_36] : memref<128x512xbf16, #tpu.memory_space<vmem>>, vector<128x128xbf16>
    %cst_37 = arith.constant dense<0.000000e+00> : vector<8x128xf32>
    %75 = tpu.matmul %66, %74, %cst_37 {dimension_numbers = #tpu.dot_dimension_numbers<[1], [0], [0], [1], [0, 0, 1, 1], [], []>} : vector<8x128xbf16>, vector<128x128xbf16>, vector<8x128xf32> -> vector<8x128xf32>
    %76 = arith.addf %73, %75 : vector<8x128xf32>
    %77 = arith.negf %76 : vector<8x128xf32>
    %78 = math.exp %77 : vector<8x128xf32>
    %cst_38 = arith.constant 1.000000e+00 : f32
    %79 = vector.broadcast %cst_38 : f32 to vector<8x128xf32>
    %80 = arith.addf %79, %78 : vector<8x128xf32>
    %81 = arith.divf %79, %80 : vector<8x128xf32>
    %c0_39 = arith.constant 0 : index
    %c128_40 = arith.constant 128 : index
    %82 = vector.load %arg3[%c0_39, %c128_40] : memref<1x512xf32, #tpu.memory_space<vmem>>, vector<1x128xf32>
    %83 = vector.broadcast %65 : vector<8x1xf32> to vector<8x128xf32>
    %84 = vector.broadcast %82 : vector<1x128xf32> to vector<8x128xf32>
    %85 = arith.mulf %83, %84 : vector<8x128xf32>
    %c0_41 = arith.constant 0 : index
    %c128_42 = arith.constant 128 : index
    %86 = vector.load %arg4[%c0_41, %c128_42] : memref<1x512xf32, #tpu.memory_space<vmem>>, vector<1x128xf32>
    %87 = vector.broadcast %86 : vector<1x128xf32> to vector<8x128xf32>
    %88 = arith.addf %85, %87 : vector<8x128xf32>
    %c0_43 = arith.constant 0 : index
    %c128_44 = arith.constant 128 : index
    %89 = vector.load %arg2[%c0_43, %c128_44] : memref<128x512xbf16, #tpu.memory_space<vmem>>, vector<128x128xbf16>
    %cst_45 = arith.constant dense<0.000000e+00> : vector<8x128xf32>
    %90 = tpu.matmul %66, %89, %cst_45 {dimension_numbers = #tpu.dot_dimension_numbers<[1], [0], [0], [1], [0, 0, 1, 1], [], []>} : vector<8x128xbf16>, vector<128x128xbf16>, vector<8x128xf32> -> vector<8x128xf32>
    %91 = arith.addf %88, %90 : vector<8x128xf32>
    %92 = arith.negf %91 : vector<8x128xf32>
    %93 = math.exp %92 : vector<8x128xf32>
    %cst_46 = arith.constant 1.000000e+00 : f32
    %94 = vector.broadcast %cst_46 : f32 to vector<8x128xf32>
    %95 = arith.addf %94, %93 : vector<8x128xf32>
    %96 = arith.divf %94, %95 : vector<8x128xf32>
    %c0_47 = arith.constant 0 : index
    %c256_48 = arith.constant 256 : index
    %97 = vector.load %arg3[%c0_47, %c256_48] : memref<1x512xf32, #tpu.memory_space<vmem>>, vector<1x128xf32>
    %98 = vector.broadcast %65 : vector<8x1xf32> to vector<8x128xf32>
    %99 = vector.broadcast %97 : vector<1x128xf32> to vector<8x128xf32>
    %100 = arith.mulf %98, %99 : vector<8x128xf32>
    %c0_49 = arith.constant 0 : index
    %c256_50 = arith.constant 256 : index
    %101 = vector.load %arg4[%c0_49, %c256_50] : memref<1x512xf32, #tpu.memory_space<vmem>>, vector<1x128xf32>
    %102 = vector.broadcast %101 : vector<1x128xf32> to vector<8x128xf32>
    %103 = arith.addf %100, %102 : vector<8x128xf32>
    %c0_51 = arith.constant 0 : index
    %c256_52 = arith.constant 256 : index
    %104 = vector.load %arg2[%c0_51, %c256_52] : memref<128x512xbf16, #tpu.memory_space<vmem>>, vector<128x128xbf16>
    %cst_53 = arith.constant dense<0.000000e+00> : vector<8x128xf32>
    %105 = tpu.matmul %66, %104, %cst_53 {dimension_numbers = #tpu.dot_dimension_numbers<[1], [0], [0], [1], [0, 0, 1, 1], [], []>} : vector<8x128xbf16>, vector<128x128xbf16>, vector<8x128xf32> -> vector<8x128xf32>
    %106 = arith.addf %103, %105 : vector<8x128xf32>
    %107 = math.tanh %106 : vector<8x128xf32>
    %c0_54 = arith.constant 0 : index
    %c384_55 = arith.constant 384 : index
    %108 = vector.load %arg3[%c0_54, %c384_55] : memref<1x512xf32, #tpu.memory_space<vmem>>, vector<1x128xf32>
    %109 = vector.broadcast %65 : vector<8x1xf32> to vector<8x128xf32>
    %110 = vector.broadcast %108 : vector<1x128xf32> to vector<8x128xf32>
    %111 = arith.mulf %109, %110 : vector<8x128xf32>
    %c0_56 = arith.constant 0 : index
    %c384_57 = arith.constant 384 : index
    %112 = vector.load %arg4[%c0_56, %c384_57] : memref<1x512xf32, #tpu.memory_space<vmem>>, vector<1x128xf32>
    %113 = vector.broadcast %112 : vector<1x128xf32> to vector<8x128xf32>
    %114 = arith.addf %111, %113 : vector<8x128xf32>
    %c0_58 = arith.constant 0 : index
    %c384_59 = arith.constant 384 : index
    %115 = vector.load %arg2[%c0_58, %c384_59] : memref<128x512xbf16, #tpu.memory_space<vmem>>, vector<128x128xbf16>
    %cst_60 = arith.constant dense<0.000000e+00> : vector<8x128xf32>
    %116 = tpu.matmul %66, %115, %cst_60 {dimension_numbers = #tpu.dot_dimension_numbers<[1], [0], [0], [1], [0, 0, 1, 1], [], []>} : vector<8x128xbf16>, vector<128x128xbf16>, vector<8x128xf32> -> vector<8x128xf32>
    %117 = arith.addf %114, %116 : vector<8x128xf32>
    %118 = arith.negf %117 : vector<8x128xf32>
    %119 = math.exp %118 : vector<8x128xf32>
    %cst_61 = arith.constant 1.000000e+00 : f32
    %120 = vector.broadcast %cst_61 : f32 to vector<8x128xf32>
    %121 = arith.addf %120, %119 : vector<8x128xf32>
    %122 = arith.divf %120, %121 : vector<8x128xf32>
    %123 = arith.mulf %96, %62 : vector<8x128xf32>
    %124 = arith.mulf %81, %107 : vector<8x128xf32>
    %125 = arith.addf %123, %124 : vector<8x128xf32>
    %126 = math.tanh %125 : vector<8x128xf32>
    %127 = arith.mulf %122, %126 : vector<8x128xf32>
    %c0_62 = arith.constant 0 : index
    %c2 = arith.constant 2 : index
    %128 = vector.load %arg1[%c0_62, %c2] : memref<8x8xf32, #tpu.memory_space<vmem>>, vector<8x1xf32>
    %129 = arith.truncf %127 : vector<8x128xf32> to vector<8x128xbf16>
    %c0_63 = arith.constant 0 : index
    %c0_64 = arith.constant 0 : index
    %130 = vector.load %arg3[%c0_63, %c0_64] : memref<1x512xf32, #tpu.memory_space<vmem>>, vector<1x128xf32>
    %131 = vector.broadcast %128 : vector<8x1xf32> to vector<8x128xf32>
    %132 = vector.broadcast %130 : vector<1x128xf32> to vector<8x128xf32>
    %133 = arith.mulf %131, %132 : vector<8x128xf32>
    %c0_65 = arith.constant 0 : index
    %c0_66 = arith.constant 0 : index
    %134 = vector.load %arg4[%c0_65, %c0_66] : memref<1x512xf32, #tpu.memory_space<vmem>>, vector<1x128xf32>
    %135 = vector.broadcast %134 : vector<1x128xf32> to vector<8x128xf32>
    %136 = arith.addf %133, %135 : vector<8x128xf32>
    %c0_67 = arith.constant 0 : index
    %c0_68 = arith.constant 0 : index
    %137 = vector.load %arg2[%c0_67, %c0_68] : memref<128x512xbf16, #tpu.memory_space<vmem>>, vector<128x128xbf16>
    %cst_69 = arith.constant dense<0.000000e+00> : vector<8x128xf32>
    %138 = tpu.matmul %129, %137, %cst_69 {dimension_numbers = #tpu.dot_dimension_numbers<[1], [0], [0], [1], [0, 0, 1, 1], [], []>} : vector<8x128xbf16>, vector<128x128xbf16>, vector<8x128xf32> -> vector<8x128xf32>
    %139 = arith.addf %136, %138 : vector<8x128xf32>
    %140 = arith.negf %139 : vector<8x128xf32>
    %141 = math.exp %140 : vector<8x128xf32>
    %cst_70 = arith.constant 1.000000e+00 : f32
    %142 = vector.broadcast %cst_70 : f32 to vector<8x128xf32>
    %143 = arith.addf %142, %141 : vector<8x128xf32>
    %144 = arith.divf %142, %143 : vector<8x128xf32>
    %c0_71 = arith.constant 0 : index
    %c128_72 = arith.constant 128 : index
    %145 = vector.load %arg3[%c0_71, %c128_72] : memref<1x512xf32, #tpu.memory_space<vmem>>, vector<1x128xf32>
    %146 = vector.broadcast %128 : vector<8x1xf32> to vector<8x128xf32>
    %147 = vector.broadcast %145 : vector<1x128xf32> to vector<8x128xf32>
    %148 = arith.mulf %146, %147 : vector<8x128xf32>
    %c0_73 = arith.constant 0 : index
    %c128_74 = arith.constant 128 : index
    %149 = vector.load %arg4[%c0_73, %c128_74] : memref<1x512xf32, #tpu.memory_space<vmem>>, vector<1x128xf32>
    %150 = vector.broadcast %149 : vector<1x128xf32> to vector<8x128xf32>
    %151 = arith.addf %148, %150 : vector<8x128xf32>
    %c0_75 = arith.constant 0 : index
    %c128_76 = arith.constant 128 : index
    %152 = vector.load %arg2[%c0_75, %c128_76] : memref<128x512xbf16, #tpu.memory_space<vmem>>, vector<128x128xbf16>
    %cst_77 = arith.constant dense<0.000000e+00> : vector<8x128xf32>
    %153 = tpu.matmul %129, %152, %cst_77 {dimension_numbers = #tpu.dot_dimension_numbers<[1], [0], [0], [1], [0, 0, 1, 1], [], []>} : vector<8x128xbf16>, vector<128x128xbf16>, vector<8x128xf32> -> vector<8x128xf32>
    %154 = arith.addf %151, %153 : vector<8x128xf32>
    %155 = arith.negf %154 : vector<8x128xf32>
    %156 = math.exp %155 : vector<8x128xf32>
    %cst_78 = arith.constant 1.000000e+00 : f32
    %157 = vector.broadcast %cst_78 : f32 to vector<8x128xf32>
    %158 = arith.addf %157, %156 : vector<8x128xf32>
    %159 = arith.divf %157, %158 : vector<8x128xf32>
    %c0_79 = arith.constant 0 : index
    %c256_80 = arith.constant 256 : index
    %160 = vector.load %arg3[%c0_79, %c256_80] : memref<1x512xf32, #tpu.memory_space<vmem>>, vector<1x128xf32>
    %161 = vector.broadcast %128 : vector<8x1xf32> to vector<8x128xf32>
    %162 = vector.broadcast %160 : vector<1x128xf32> to vector<8x128xf32>
    %163 = arith.mulf %161, %162 : vector<8x128xf32>
    %c0_81 = arith.constant 0 : index
    %c256_82 = arith.constant 256 : index
    %164 = vector.load %arg4[%c0_81, %c256_82] : memref<1x512xf32, #tpu.memory_space<vmem>>, vector<1x128xf32>
    %165 = vector.broadcast %164 : vector<1x128xf32> to vector<8x128xf32>
    %166 = arith.addf %163, %165 : vector<8x128xf32>
    %c0_83 = arith.constant 0 : index
    %c256_84 = arith.constant 256 : index
    %167 = vector.load %arg2[%c0_83, %c256_84] : memref<128x512xbf16, #tpu.memory_space<vmem>>, vector<128x128xbf16>
    %cst_85 = arith.constant dense<0.000000e+00> : vector<8x128xf32>
    %168 = tpu.matmul %129, %167, %cst_85 {dimension_numbers = #tpu.dot_dimension_numbers<[1], [0], [0], [1], [0, 0, 1, 1], [], []>} : vector<8x128xbf16>, vector<128x128xbf16>, vector<8x128xf32> -> vector<8x128xf32>
    %169 = arith.addf %166, %168 : vector<8x128xf32>
    %170 = math.tanh %169 : vector<8x128xf32>
    %c0_86 = arith.constant 0 : index
    %c384_87 = arith.constant 384 : index
    %171 = vector.load %arg3[%c0_86, %c384_87] : memref<1x512xf32, #tpu.memory_space<vmem>>, vector<1x128xf32>
    %172 = vector.broadcast %128 : vector<8x1xf32> to vector<8x128xf32>
    %173 = vector.broadcast %171 : vector<1x128xf32> to vector<8x128xf32>
    %174 = arith.mulf %172, %173 : vector<8x128xf32>
    %c0_88 = arith.constant 0 : index
    %c384_89 = arith.constant 384 : index
    %175 = vector.load %arg4[%c0_88, %c384_89] : memref<1x512xf32, #tpu.memory_space<vmem>>, vector<1x128xf32>
    %176 = vector.broadcast %175 : vector<1x128xf32> to vector<8x128xf32>
    %177 = arith.addf %174, %176 : vector<8x128xf32>
    %c0_90 = arith.constant 0 : index
    %c384_91 = arith.constant 384 : index
    %178 = vector.load %arg2[%c0_90, %c384_91] : memref<128x512xbf16, #tpu.memory_space<vmem>>, vector<128x128xbf16>
    %cst_92 = arith.constant dense<0.000000e+00> : vector<8x128xf32>
    %179 = tpu.matmul %129, %178, %cst_92 {dimension_numbers = #tpu.dot_dimension_numbers<[1], [0], [0], [1], [0, 0, 1, 1], [], []>} : vector<8x128xbf16>, vector<128x128xbf16>, vector<8x128xf32> -> vector<8x128xf32>
    %180 = arith.addf %177, %179 : vector<8x128xf32>
    %181 = arith.negf %180 : vector<8x128xf32>
    %182 = math.exp %181 : vector<8x128xf32>
    %cst_93 = arith.constant 1.000000e+00 : f32
    %183 = vector.broadcast %cst_93 : f32 to vector<8x128xf32>
    %184 = arith.addf %183, %182 : vector<8x128xf32>
    %185 = arith.divf %183, %184 : vector<8x128xf32>
    %186 = arith.mulf %159, %125 : vector<8x128xf32>
    %187 = arith.mulf %144, %170 : vector<8x128xf32>
    %188 = arith.addf %186, %187 : vector<8x128xf32>
    %189 = math.tanh %188 : vector<8x128xf32>
    %190 = arith.mulf %185, %189 : vector<8x128xf32>
    %c0_94 = arith.constant 0 : index
    %c3 = arith.constant 3 : index
    %191 = vector.load %arg1[%c0_94, %c3] : memref<8x8xf32, #tpu.memory_space<vmem>>, vector<8x1xf32>
    %192 = arith.truncf %190 : vector<8x128xf32> to vector<8x128xbf16>
    %c0_95 = arith.constant 0 : index
    %c0_96 = arith.constant 0 : index
    %193 = vector.load %arg3[%c0_95, %c0_96] : memref<1x512xf32, #tpu.memory_space<vmem>>, vector<1x128xf32>
    %194 = vector.broadcast %191 : vector<8x1xf32> to vector<8x128xf32>
    %195 = vector.broadcast %193 : vector<1x128xf32> to vector<8x128xf32>
    %196 = arith.mulf %194, %195 : vector<8x128xf32>
    %c0_97 = arith.constant 0 : index
    %c0_98 = arith.constant 0 : index
    %197 = vector.load %arg4[%c0_97, %c0_98] : memref<1x512xf32, #tpu.memory_space<vmem>>, vector<1x128xf32>
    %198 = vector.broadcast %197 : vector<1x128xf32> to vector<8x128xf32>
    %199 = arith.addf %196, %198 : vector<8x128xf32>
    %c0_99 = arith.constant 0 : index
    %c0_100 = arith.constant 0 : index
    %200 = vector.load %arg2[%c0_99, %c0_100] : memref<128x512xbf16, #tpu.memory_space<vmem>>, vector<128x128xbf16>
    %cst_101 = arith.constant dense<0.000000e+00> : vector<8x128xf32>
    %201 = tpu.matmul %192, %200, %cst_101 {dimension_numbers = #tpu.dot_dimension_numbers<[1], [0], [0], [1], [0, 0, 1, 1], [], []>} : vector<8x128xbf16>, vector<128x128xbf16>, vector<8x128xf32> -> vector<8x128xf32>
    %202 = arith.addf %199, %201 : vector<8x128xf32>
    %203 = arith.negf %202 : vector<8x128xf32>
    %204 = math.exp %203 : vector<8x128xf32>
    %cst_102 = arith.constant 1.000000e+00 : f32
    %205 = vector.broadcast %cst_102 : f32 to vector<8x128xf32>
    %206 = arith.addf %205, %204 : vector<8x128xf32>
    %207 = arith.divf %205, %206 : vector<8x128xf32>
    %c0_103 = arith.constant 0 : index
    %c128_104 = arith.constant 128 : index
    %208 = vector.load %arg3[%c0_103, %c128_104] : memref<1x512xf32, #tpu.memory_space<vmem>>, vector<1x128xf32>
    %209 = vector.broadcast %191 : vector<8x1xf32> to vector<8x128xf32>
    %210 = vector.broadcast %208 : vector<1x128xf32> to vector<8x128xf32>
    %211 = arith.mulf %209, %210 : vector<8x128xf32>
    %c0_105 = arith.constant 0 : index
    %c128_106 = arith.constant 128 : index
    %212 = vector.load %arg4[%c0_105, %c128_106] : memref<1x512xf32, #tpu.memory_space<vmem>>, vector<1x128xf32>
    %213 = vector.broadcast %212 : vector<1x128xf32> to vector<8x128xf32>
    %214 = arith.addf %211, %213 : vector<8x128xf32>
    %c0_107 = arith.constant 0 : index
    %c128_108 = arith.constant 128 : index
    %215 = vector.load %arg2[%c0_107, %c128_108] : memref<128x512xbf16, #tpu.memory_space<vmem>>, vector<128x128xbf16>
    %cst_109 = arith.constant dense<0.000000e+00> : vector<8x128xf32>
    %216 = tpu.matmul %192, %215, %cst_109 {dimension_numbers = #tpu.dot_dimension_numbers<[1], [0], [0], [1], [0, 0, 1, 1], [], []>} : vector<8x128xbf16>, vector<128x128xbf16>, vector<8x128xf32> -> vector<8x128xf32>
    %217 = arith.addf %214, %216 : vector<8x128xf32>
    %218 = arith.negf %217 : vector<8x128xf32>
    %219 = math.exp %218 : vector<8x128xf32>
    %cst_110 = arith.constant 1.000000e+00 : f32
    %220 = vector.broadcast %cst_110 : f32 to vector<8x128xf32>
    %221 = arith.addf %220, %219 : vector<8x128xf32>
    %222 = arith.divf %220, %221 : vector<8x128xf32>
    %c0_111 = arith.constant 0 : index
    %c256_112 = arith.constant 256 : index
    %223 = vector.load %arg3[%c0_111, %c256_112] : memref<1x512xf32, #tpu.memory_space<vmem>>, vector<1x128xf32>
    %224 = vector.broadcast %191 : vector<8x1xf32> to vector<8x128xf32>
    %225 = vector.broadcast %223 : vector<1x128xf32> to vector<8x128xf32>
    %226 = arith.mulf %224, %225 : vector<8x128xf32>
    %c0_113 = arith.constant 0 : index
    %c256_114 = arith.constant 256 : index
    %227 = vector.load %arg4[%c0_113, %c256_114] : memref<1x512xf32, #tpu.memory_space<vmem>>, vector<1x128xf32>
    %228 = vector.broadcast %227 : vector<1x128xf32> to vector<8x128xf32>
    %229 = arith.addf %226, %228 : vector<8x128xf32>
    %c0_115 = arith.constant 0 : index
    %c256_116 = arith.constant 256 : index
    %230 = vector.load %arg2[%c0_115, %c256_116] : memref<128x512xbf16, #tpu.memory_space<vmem>>, vector<128x128xbf16>
    %cst_117 = arith.constant dense<0.000000e+00> : vector<8x128xf32>
    %231 = tpu.matmul %192, %230, %cst_117 {dimension_numbers = #tpu.dot_dimension_numbers<[1], [0], [0], [1], [0, 0, 1, 1], [], []>} : vector<8x128xbf16>, vector<128x128xbf16>, vector<8x128xf32> -> vector<8x128xf32>
    %232 = arith.addf %229, %231 : vector<8x128xf32>
    %233 = math.tanh %232 : vector<8x128xf32>
    %c0_118 = arith.constant 0 : index
    %c384_119 = arith.constant 384 : index
    %234 = vector.load %arg3[%c0_118, %c384_119] : memref<1x512xf32, #tpu.memory_space<vmem>>, vector<1x128xf32>
    %235 = vector.broadcast %191 : vector<8x1xf32> to vector<8x128xf32>
    %236 = vector.broadcast %234 : vector<1x128xf32> to vector<8x128xf32>
    %237 = arith.mulf %235, %236 : vector<8x128xf32>
    %c0_120 = arith.constant 0 : index
    %c384_121 = arith.constant 384 : index
    %238 = vector.load %arg4[%c0_120, %c384_121] : memref<1x512xf32, #tpu.memory_space<vmem>>, vector<1x128xf32>
    %239 = vector.broadcast %238 : vector<1x128xf32> to vector<8x128xf32>
    %240 = arith.addf %237, %239 : vector<8x128xf32>
    %c0_122 = arith.constant 0 : index
    %c384_123 = arith.constant 384 : index
    %241 = vector.load %arg2[%c0_122, %c384_123] : memref<128x512xbf16, #tpu.memory_space<vmem>>, vector<128x128xbf16>
    %cst_124 = arith.constant dense<0.000000e+00> : vector<8x128xf32>
    %242 = tpu.matmul %192, %241, %cst_124 {dimension_numbers = #tpu.dot_dimension_numbers<[1], [0], [0], [1], [0, 0, 1, 1], [], []>} : vector<8x128xbf16>, vector<128x128xbf16>, vector<8x128xf32> -> vector<8x128xf32>
    %243 = arith.addf %240, %242 : vector<8x128xf32>
    %244 = arith.negf %243 : vector<8x128xf32>
    %245 = math.exp %244 : vector<8x128xf32>
    %cst_125 = arith.constant 1.000000e+00 : f32
    %246 = vector.broadcast %cst_125 : f32 to vector<8x128xf32>
    %247 = arith.addf %246, %245 : vector<8x128xf32>
    %248 = arith.divf %246, %247 : vector<8x128xf32>
    %249 = arith.mulf %222, %188 : vector<8x128xf32>
    %250 = arith.mulf %207, %233 : vector<8x128xf32>
    %251 = arith.addf %249, %250 : vector<8x128xf32>
    %252 = math.tanh %251 : vector<8x128xf32>
    %253 = arith.mulf %248, %252 : vector<8x128xf32>
    %c0_126 = arith.constant 0 : index
    %c4 = arith.constant 4 : index
    %254 = vector.load %arg1[%c0_126, %c4] : memref<8x8xf32, #tpu.memory_space<vmem>>, vector<8x1xf32>
    %255 = arith.truncf %253 : vector<8x128xf32> to vector<8x128xbf16>
    %c0_127 = arith.constant 0 : index
    %c0_128 = arith.constant 0 : index
    %256 = vector.load %arg3[%c0_127, %c0_128] : memref<1x512xf32, #tpu.memory_space<vmem>>, vector<1x128xf32>
    %257 = vector.broadcast %254 : vector<8x1xf32> to vector<8x128xf32>
    %258 = vector.broadcast %256 : vector<1x128xf32> to vector<8x128xf32>
    %259 = arith.mulf %257, %258 : vector<8x128xf32>
    %c0_129 = arith.constant 0 : index
    %c0_130 = arith.constant 0 : index
    %260 = vector.load %arg4[%c0_129, %c0_130] : memref<1x512xf32, #tpu.memory_space<vmem>>, vector<1x128xf32>
    %261 = vector.broadcast %260 : vector<1x128xf32> to vector<8x128xf32>
    %262 = arith.addf %259, %261 : vector<8x128xf32>
    %c0_131 = arith.constant 0 : index
    %c0_132 = arith.constant 0 : index
    %263 = vector.load %arg2[%c0_131, %c0_132] : memref<128x512xbf16, #tpu.memory_space<vmem>>, vector<128x128xbf16>
    %cst_133 = arith.constant dense<0.000000e+00> : vector<8x128xf32>
    %264 = tpu.matmul %255, %263, %cst_133 {dimension_numbers = #tpu.dot_dimension_numbers<[1], [0], [0], [1], [0, 0, 1, 1], [], []>} : vector<8x128xbf16>, vector<128x128xbf16>, vector<8x128xf32> -> vector<8x128xf32>
    %265 = arith.addf %262, %264 : vector<8x128xf32>
    %266 = arith.negf %265 : vector<8x128xf32>
    %267 = math.exp %266 : vector<8x128xf32>
    %cst_134 = arith.constant 1.000000e+00 : f32
    %268 = vector.broadcast %cst_134 : f32 to vector<8x128xf32>
    %269 = arith.addf %268, %267 : vector<8x128xf32>
    %270 = arith.divf %268, %269 : vector<8x128xf32>
    %c0_135 = arith.constant 0 : index
    %c128_136 = arith.constant 128 : index
    %271 = vector.load %arg3[%c0_135, %c128_136] : memref<1x512xf32, #tpu.memory_space<vmem>>, vector<1x128xf32>
    %272 = vector.broadcast %254 : vector<8x1xf32> to vector<8x128xf32>
    %273 = vector.broadcast %271 : vector<1x128xf32> to vector<8x128xf32>
    %274 = arith.mulf %272, %273 : vector<8x128xf32>
    %c0_137 = arith.constant 0 : index
    %c128_138 = arith.constant 128 : index
    %275 = vector.load %arg4[%c0_137, %c128_138] : memref<1x512xf32, #tpu.memory_space<vmem>>, vector<1x128xf32>
    %276 = vector.broadcast %275 : vector<1x128xf32> to vector<8x128xf32>
    %277 = arith.addf %274, %276 : vector<8x128xf32>
    %c0_139 = arith.constant 0 : index
    %c128_140 = arith.constant 128 : index
    %278 = vector.load %arg2[%c0_139, %c128_140] : memref<128x512xbf16, #tpu.memory_space<vmem>>, vector<128x128xbf16>
    %cst_141 = arith.constant dense<0.000000e+00> : vector<8x128xf32>
    %279 = tpu.matmul %255, %278, %cst_141 {dimension_numbers = #tpu.dot_dimension_numbers<[1], [0], [0], [1], [0, 0, 1, 1], [], []>} : vector<8x128xbf16>, vector<128x128xbf16>, vector<8x128xf32> -> vector<8x128xf32>
    %280 = arith.addf %277, %279 : vector<8x128xf32>
    %281 = arith.negf %280 : vector<8x128xf32>
    %282 = math.exp %281 : vector<8x128xf32>
    %cst_142 = arith.constant 1.000000e+00 : f32
    %283 = vector.broadcast %cst_142 : f32 to vector<8x128xf32>
    %284 = arith.addf %283, %282 : vector<8x128xf32>
    %285 = arith.divf %283, %284 : vector<8x128xf32>
    %c0_143 = arith.constant 0 : index
    %c256_144 = arith.constant 256 : index
    %286 = vector.load %arg3[%c0_143, %c256_144] : memref<1x512xf32, #tpu.memory_space<vmem>>, vector<1x128xf32>
    %287 = vector.broadcast %254 : vector<8x1xf32> to vector<8x128xf32>
    %288 = vector.broadcast %286 : vector<1x128xf32> to vector<8x128xf32>
    %289 = arith.mulf %287, %288 : vector<8x128xf32>
    %c0_145 = arith.constant 0 : index
    %c256_146 = arith.constant 256 : index
    %290 = vector.load %arg4[%c0_145, %c256_146] : memref<1x512xf32, #tpu.memory_space<vmem>>, vector<1x128xf32>
    %291 = vector.broadcast %290 : vector<1x128xf32> to vector<8x128xf32>
    %292 = arith.addf %289, %291 : vector<8x128xf32>
    %c0_147 = arith.constant 0 : index
    %c256_148 = arith.constant 256 : index
    %293 = vector.load %arg2[%c0_147, %c256_148] : memref<128x512xbf16, #tpu.memory_space<vmem>>, vector<128x128xbf16>
    %cst_149 = arith.constant dense<0.000000e+00> : vector<8x128xf32>
    %294 = tpu.matmul %255, %293, %cst_149 {dimension_numbers = #tpu.dot_dimension_numbers<[1], [0], [0], [1], [0, 0, 1, 1], [], []>} : vector<8x128xbf16>, vector<128x128xbf16>, vector<8x128xf32> -> vector<8x128xf32>
    %295 = arith.addf %292, %294 : vector<8x128xf32>
    %296 = math.tanh %295 : vector<8x128xf32>
    %c0_150 = arith.constant 0 : index
    %c384_151 = arith.constant 384 : index
    %297 = vector.load %arg3[%c0_150, %c384_151] : memref<1x512xf32, #tpu.memory_space<vmem>>, vector<1x128xf32>
    %298 = vector.broadcast %254 : vector<8x1xf32> to vector<8x128xf32>
    %299 = vector.broadcast %297 : vector<1x128xf32> to vector<8x128xf32>
    %300 = arith.mulf %298, %299 : vector<8x128xf32>
    %c0_152 = arith.constant 0 : index
    %c384_153 = arith.constant 384 : index
    %301 = vector.load %arg4[%c0_152, %c384_153] : memref<1x512xf32, #tpu.memory_space<vmem>>, vector<1x128xf32>
    %302 = vector.broadcast %301 : vector<1x128xf32> to vector<8x128xf32>
    %303 = arith.addf %300, %302 : vector<8x128xf32>
    %c0_154 = arith.constant 0 : index
    %c384_155 = arith.constant 384 : index
    %304 = vector.load %arg2[%c0_154, %c384_155] : memref<128x512xbf16, #tpu.memory_space<vmem>>, vector<128x128xbf16>
    %cst_156 = arith.constant dense<0.000000e+00> : vector<8x128xf32>
    %305 = tpu.matmul %255, %304, %cst_156 {dimension_numbers = #tpu.dot_dimension_numbers<[1], [0], [0], [1], [0, 0, 1, 1], [], []>} : vector<8x128xbf16>, vector<128x128xbf16>, vector<8x128xf32> -> vector<8x128xf32>
    %306 = arith.addf %303, %305 : vector<8x128xf32>
    %307 = arith.negf %306 : vector<8x128xf32>
    %308 = math.exp %307 : vector<8x128xf32>
    %cst_157 = arith.constant 1.000000e+00 : f32
    %309 = vector.broadcast %cst_157 : f32 to vector<8x128xf32>
    %310 = arith.addf %309, %308 : vector<8x128xf32>
    %311 = arith.divf %309, %310 : vector<8x128xf32>
    %312 = arith.mulf %285, %251 : vector<8x128xf32>
    %313 = arith.mulf %270, %296 : vector<8x128xf32>
    %314 = arith.addf %312, %313 : vector<8x128xf32>
    %315 = math.tanh %314 : vector<8x128xf32>
    %316 = arith.mulf %311, %315 : vector<8x128xf32>
    %c0_158 = arith.constant 0 : index
    %c5 = arith.constant 5 : index
    %317 = vector.load %arg1[%c0_158, %c5] : memref<8x8xf32, #tpu.memory_space<vmem>>, vector<8x1xf32>
    %318 = arith.truncf %316 : vector<8x128xf32> to vector<8x128xbf16>
    %c0_159 = arith.constant 0 : index
    %c0_160 = arith.constant 0 : index
    %319 = vector.load %arg3[%c0_159, %c0_160] : memref<1x512xf32, #tpu.memory_space<vmem>>, vector<1x128xf32>
    %320 = vector.broadcast %317 : vector<8x1xf32> to vector<8x128xf32>
    %321 = vector.broadcast %319 : vector<1x128xf32> to vector<8x128xf32>
    %322 = arith.mulf %320, %321 : vector<8x128xf32>
    %c0_161 = arith.constant 0 : index
    %c0_162 = arith.constant 0 : index
    %323 = vector.load %arg4[%c0_161, %c0_162] : memref<1x512xf32, #tpu.memory_space<vmem>>, vector<1x128xf32>
    %324 = vector.broadcast %323 : vector<1x128xf32> to vector<8x128xf32>
    %325 = arith.addf %322, %324 : vector<8x128xf32>
    %c0_163 = arith.constant 0 : index
    %c0_164 = arith.constant 0 : index
    %326 = vector.load %arg2[%c0_163, %c0_164] : memref<128x512xbf16, #tpu.memory_space<vmem>>, vector<128x128xbf16>
    %cst_165 = arith.constant dense<0.000000e+00> : vector<8x128xf32>
    %327 = tpu.matmul %318, %326, %cst_165 {dimension_numbers = #tpu.dot_dimension_numbers<[1], [0], [0], [1], [0, 0, 1, 1], [], []>} : vector<8x128xbf16>, vector<128x128xbf16>, vector<8x128xf32> -> vector<8x128xf32>
    %328 = arith.addf %325, %327 : vector<8x128xf32>
    %329 = arith.negf %328 : vector<8x128xf32>
    %330 = math.exp %329 : vector<8x128xf32>
    %cst_166 = arith.constant 1.000000e+00 : f32
    %331 = vector.broadcast %cst_166 : f32 to vector<8x128xf32>
    %332 = arith.addf %331, %330 : vector<8x128xf32>
    %333 = arith.divf %331, %332 : vector<8x128xf32>
    %c0_167 = arith.constant 0 : index
    %c128_168 = arith.constant 128 : index
    %334 = vector.load %arg3[%c0_167, %c128_168] : memref<1x512xf32, #tpu.memory_space<vmem>>, vector<1x128xf32>
    %335 = vector.broadcast %317 : vector<8x1xf32> to vector<8x128xf32>
    %336 = vector.broadcast %334 : vector<1x128xf32> to vector<8x128xf32>
    %337 = arith.mulf %335, %336 : vector<8x128xf32>
    %c0_169 = arith.constant 0 : index
    %c128_170 = arith.constant 128 : index
    %338 = vector.load %arg4[%c0_169, %c128_170] : memref<1x512xf32, #tpu.memory_space<vmem>>, vector<1x128xf32>
    %339 = vector.broadcast %338 : vector<1x128xf32> to vector<8x128xf32>
    %340 = arith.addf %337, %339 : vector<8x128xf32>
    %c0_171 = arith.constant 0 : index
    %c128_172 = arith.constant 128 : index
    %341 = vector.load %arg2[%c0_171, %c128_172] : memref<128x512xbf16, #tpu.memory_space<vmem>>, vector<128x128xbf16>
    %cst_173 = arith.constant dense<0.000000e+00> : vector<8x128xf32>
    %342 = tpu.matmul %318, %341, %cst_173 {dimension_numbers = #tpu.dot_dimension_numbers<[1], [0], [0], [1], [0, 0, 1, 1], [], []>} : vector<8x128xbf16>, vector<128x128xbf16>, vector<8x128xf32> -> vector<8x128xf32>
    %343 = arith.addf %340, %342 : vector<8x128xf32>
    %344 = arith.negf %343 : vector<8x128xf32>
    %345 = math.exp %344 : vector<8x128xf32>
    %cst_174 = arith.constant 1.000000e+00 : f32
    %346 = vector.broadcast %cst_174 : f32 to vector<8x128xf32>
    %347 = arith.addf %346, %345 : vector<8x128xf32>
    %348 = arith.divf %346, %347 : vector<8x128xf32>
    %c0_175 = arith.constant 0 : index
    %c256_176 = arith.constant 256 : index
    %349 = vector.load %arg3[%c0_175, %c256_176] : memref<1x512xf32, #tpu.memory_space<vmem>>, vector<1x128xf32>
    %350 = vector.broadcast %317 : vector<8x1xf32> to vector<8x128xf32>
    %351 = vector.broadcast %349 : vector<1x128xf32> to vector<8x128xf32>
    %352 = arith.mulf %350, %351 : vector<8x128xf32>
    %c0_177 = arith.constant 0 : index
    %c256_178 = arith.constant 256 : index
    %353 = vector.load %arg4[%c0_177, %c256_178] : memref<1x512xf32, #tpu.memory_space<vmem>>, vector<1x128xf32>
    %354 = vector.broadcast %353 : vector<1x128xf32> to vector<8x128xf32>
    %355 = arith.addf %352, %354 : vector<8x128xf32>
    %c0_179 = arith.constant 0 : index
    %c256_180 = arith.constant 256 : index
    %356 = vector.load %arg2[%c0_179, %c256_180] : memref<128x512xbf16, #tpu.memory_space<vmem>>, vector<128x128xbf16>
    %cst_181 = arith.constant dense<0.000000e+00> : vector<8x128xf32>
    %357 = tpu.matmul %318, %356, %cst_181 {dimension_numbers = #tpu.dot_dimension_numbers<[1], [0], [0], [1], [0, 0, 1, 1], [], []>} : vector<8x128xbf16>, vector<128x128xbf16>, vector<8x128xf32> -> vector<8x128xf32>
    %358 = arith.addf %355, %357 : vector<8x128xf32>
    %359 = math.tanh %358 : vector<8x128xf32>
    %c0_182 = arith.constant 0 : index
    %c384_183 = arith.constant 384 : index
    %360 = vector.load %arg3[%c0_182, %c384_183] : memref<1x512xf32, #tpu.memory_space<vmem>>, vector<1x128xf32>
    %361 = vector.broadcast %317 : vector<8x1xf32> to vector<8x128xf32>
    %362 = vector.broadcast %360 : vector<1x128xf32> to vector<8x128xf32>
    %363 = arith.mulf %361, %362 : vector<8x128xf32>
    %c0_184 = arith.constant 0 : index
    %c384_185 = arith.constant 384 : index
    %364 = vector.load %arg4[%c0_184, %c384_185] : memref<1x512xf32, #tpu.memory_space<vmem>>, vector<1x128xf32>
    %365 = vector.broadcast %364 : vector<1x128xf32> to vector<8x128xf32>
    %366 = arith.addf %363, %365 : vector<8x128xf32>
    %c0_186 = arith.constant 0 : index
    %c384_187 = arith.constant 384 : index
    %367 = vector.load %arg2[%c0_186, %c384_187] : memref<128x512xbf16, #tpu.memory_space<vmem>>, vector<128x128xbf16>
    %cst_188 = arith.constant dense<0.000000e+00> : vector<8x128xf32>
    %368 = tpu.matmul %318, %367, %cst_188 {dimension_numbers = #tpu.dot_dimension_numbers<[1], [0], [0], [1], [0, 0, 1, 1], [], []>} : vector<8x128xbf16>, vector<128x128xbf16>, vector<8x128xf32> -> vector<8x128xf32>
    %369 = arith.addf %366, %368 : vector<8x128xf32>
    %370 = arith.negf %369 : vector<8x128xf32>
    %371 = math.exp %370 : vector<8x128xf32>
    %cst_189 = arith.constant 1.000000e+00 : f32
    %372 = vector.broadcast %cst_189 : f32 to vector<8x128xf32>
    %373 = arith.addf %372, %371 : vector<8x128xf32>
    %374 = arith.divf %372, %373 : vector<8x128xf32>
    %375 = arith.mulf %348, %314 : vector<8x128xf32>
    %376 = arith.mulf %333, %359 : vector<8x128xf32>
    %377 = arith.addf %375, %376 : vector<8x128xf32>
    %378 = math.tanh %377 : vector<8x128xf32>
    %379 = arith.mulf %374, %378 : vector<8x128xf32>
    %c0_190 = arith.constant 0 : index
    %c6 = arith.constant 6 : index
    %380 = vector.load %arg1[%c0_190, %c6] : memref<8x8xf32, #tpu.memory_space<vmem>>, vector<8x1xf32>
    %381 = arith.truncf %379 : vector<8x128xf32> to vector<8x128xbf16>
    %c0_191 = arith.constant 0 : index
    %c0_192 = arith.constant 0 : index
    %382 = vector.load %arg3[%c0_191, %c0_192] : memref<1x512xf32, #tpu.memory_space<vmem>>, vector<1x128xf32>
    %383 = vector.broadcast %380 : vector<8x1xf32> to vector<8x128xf32>
    %384 = vector.broadcast %382 : vector<1x128xf32> to vector<8x128xf32>
    %385 = arith.mulf %383, %384 : vector<8x128xf32>
    %c0_193 = arith.constant 0 : index
    %c0_194 = arith.constant 0 : index
    %386 = vector.load %arg4[%c0_193, %c0_194] : memref<1x512xf32, #tpu.memory_space<vmem>>, vector<1x128xf32>
    %387 = vector.broadcast %386 : vector<1x128xf32> to vector<8x128xf32>
    %388 = arith.addf %385, %387 : vector<8x128xf32>
    %c0_195 = arith.constant 0 : index
    %c0_196 = arith.constant 0 : index
    %389 = vector.load %arg2[%c0_195, %c0_196] : memref<128x512xbf16, #tpu.memory_space<vmem>>, vector<128x128xbf16>
    %cst_197 = arith.constant dense<0.000000e+00> : vector<8x128xf32>
    %390 = tpu.matmul %381, %389, %cst_197 {dimension_numbers = #tpu.dot_dimension_numbers<[1], [0], [0], [1], [0, 0, 1, 1], [], []>} : vector<8x128xbf16>, vector<128x128xbf16>, vector<8x128xf32> -> vector<8x128xf32>
    %391 = arith.addf %388, %390 : vector<8x128xf32>
    %392 = arith.negf %391 : vector<8x128xf32>
    %393 = math.exp %392 : vector<8x128xf32>
    %cst_198 = arith.constant 1.000000e+00 : f32
    %394 = vector.broadcast %cst_198 : f32 to vector<8x128xf32>
    %395 = arith.addf %394, %393 : vector<8x128xf32>
    %396 = arith.divf %394, %395 : vector<8x128xf32>
    %c0_199 = arith.constant 0 : index
    %c128_200 = arith.constant 128 : index
    %397 = vector.load %arg3[%c0_199, %c128_200] : memref<1x512xf32, #tpu.memory_space<vmem>>, vector<1x128xf32>
    %398 = vector.broadcast %380 : vector<8x1xf32> to vector<8x128xf32>
    %399 = vector.broadcast %397 : vector<1x128xf32> to vector<8x128xf32>
    %400 = arith.mulf %398, %399 : vector<8x128xf32>
    %c0_201 = arith.constant 0 : index
    %c128_202 = arith.constant 128 : index
    %401 = vector.load %arg4[%c0_201, %c128_202] : memref<1x512xf32, #tpu.memory_space<vmem>>, vector<1x128xf32>
    %402 = vector.broadcast %401 : vector<1x128xf32> to vector<8x128xf32>
    %403 = arith.addf %400, %402 : vector<8x128xf32>
    %c0_203 = arith.constant 0 : index
    %c128_204 = arith.constant 128 : index
    %404 = vector.load %arg2[%c0_203, %c128_204] : memref<128x512xbf16, #tpu.memory_space<vmem>>, vector<128x128xbf16>
    %cst_205 = arith.constant dense<0.000000e+00> : vector<8x128xf32>
    %405 = tpu.matmul %381, %404, %cst_205 {dimension_numbers = #tpu.dot_dimension_numbers<[1], [0], [0], [1], [0, 0, 1, 1], [], []>} : vector<8x128xbf16>, vector<128x128xbf16>, vector<8x128xf32> -> vector<8x128xf32>
    %406 = arith.addf %403, %405 : vector<8x128xf32>
    %407 = arith.negf %406 : vector<8x128xf32>
    %408 = math.exp %407 : vector<8x128xf32>
    %cst_206 = arith.constant 1.000000e+00 : f32
    %409 = vector.broadcast %cst_206 : f32 to vector<8x128xf32>
    %410 = arith.addf %409, %408 : vector<8x128xf32>
    %411 = arith.divf %409, %410 : vector<8x128xf32>
    %c0_207 = arith.constant 0 : index
    %c256_208 = arith.constant 256 : index
    %412 = vector.load %arg3[%c0_207, %c256_208] : memref<1x512xf32, #tpu.memory_space<vmem>>, vector<1x128xf32>
    %413 = vector.broadcast %380 : vector<8x1xf32> to vector<8x128xf32>
    %414 = vector.broadcast %412 : vector<1x128xf32> to vector<8x128xf32>
    %415 = arith.mulf %413, %414 : vector<8x128xf32>
    %c0_209 = arith.constant 0 : index
    %c256_210 = arith.constant 256 : index
    %416 = vector.load %arg4[%c0_209, %c256_210] : memref<1x512xf32, #tpu.memory_space<vmem>>, vector<1x128xf32>
    %417 = vector.broadcast %416 : vector<1x128xf32> to vector<8x128xf32>
    %418 = arith.addf %415, %417 : vector<8x128xf32>
    %c0_211 = arith.constant 0 : index
    %c256_212 = arith.constant 256 : index
    %419 = vector.load %arg2[%c0_211, %c256_212] : memref<128x512xbf16, #tpu.memory_space<vmem>>, vector<128x128xbf16>
    %cst_213 = arith.constant dense<0.000000e+00> : vector<8x128xf32>
    %420 = tpu.matmul %381, %419, %cst_213 {dimension_numbers = #tpu.dot_dimension_numbers<[1], [0], [0], [1], [0, 0, 1, 1], [], []>} : vector<8x128xbf16>, vector<128x128xbf16>, vector<8x128xf32> -> vector<8x128xf32>
    %421 = arith.addf %418, %420 : vector<8x128xf32>
    %422 = math.tanh %421 : vector<8x128xf32>
    %c0_214 = arith.constant 0 : index
    %c384_215 = arith.constant 384 : index
    %423 = vector.load %arg3[%c0_214, %c384_215] : memref<1x512xf32, #tpu.memory_space<vmem>>, vector<1x128xf32>
    %424 = vector.broadcast %380 : vector<8x1xf32> to vector<8x128xf32>
    %425 = vector.broadcast %423 : vector<1x128xf32> to vector<8x128xf32>
    %426 = arith.mulf %424, %425 : vector<8x128xf32>
    %c0_216 = arith.constant 0 : index
    %c384_217 = arith.constant 384 : index
    %427 = vector.load %arg4[%c0_216, %c384_217] : memref<1x512xf32, #tpu.memory_space<vmem>>, vector<1x128xf32>
    %428 = vector.broadcast %427 : vector<1x128xf32> to vector<8x128xf32>
    %429 = arith.addf %426, %428 : vector<8x128xf32>
    %c0_218 = arith.constant 0 : index
    %c384_219 = arith.constant 384 : index
    %430 = vector.load %arg2[%c0_218, %c384_219] : memref<128x512xbf16, #tpu.memory_space<vmem>>, vector<128x128xbf16>
    %cst_220 = arith.constant dense<0.000000e+00> : vector<8x128xf32>
    %431 = tpu.matmul %381, %430, %cst_220 {dimension_numbers = #tpu.dot_dimension_numbers<[1], [0], [0], [1], [0, 0, 1, 1], [], []>} : vector<8x128xbf16>, vector<128x128xbf16>, vector<8x128xf32> -> vector<8x128xf32>
    %432 = arith.addf %429, %431 : vector<8x128xf32>
    %433 = arith.negf %432 : vector<8x128xf32>
    %434 = math.exp %433 : vector<8x128xf32>
    %cst_221 = arith.constant 1.000000e+00 : f32
    %435 = vector.broadcast %cst_221 : f32 to vector<8x128xf32>
    %436 = arith.addf %435, %434 : vector<8x128xf32>
    %437 = arith.divf %435, %436 : vector<8x128xf32>
    %438 = arith.mulf %411, %377 : vector<8x128xf32>
    %439 = arith.mulf %396, %422 : vector<8x128xf32>
    %440 = arith.addf %438, %439 : vector<8x128xf32>
    %441 = math.tanh %440 : vector<8x128xf32>
    %442 = arith.mulf %437, %441 : vector<8x128xf32>
    %c0_222 = arith.constant 0 : index
    %c7 = arith.constant 7 : index
    %443 = vector.load %arg1[%c0_222, %c7] : memref<8x8xf32, #tpu.memory_space<vmem>>, vector<8x1xf32>
    %444 = arith.truncf %442 : vector<8x128xf32> to vector<8x128xbf16>
    %c0_223 = arith.constant 0 : index
    %c0_224 = arith.constant 0 : index
    %445 = vector.load %arg3[%c0_223, %c0_224] : memref<1x512xf32, #tpu.memory_space<vmem>>, vector<1x128xf32>
    %446 = vector.broadcast %443 : vector<8x1xf32> to vector<8x128xf32>
    %447 = vector.broadcast %445 : vector<1x128xf32> to vector<8x128xf32>
    %448 = arith.mulf %446, %447 : vector<8x128xf32>
    %c0_225 = arith.constant 0 : index
    %c0_226 = arith.constant 0 : index
    %449 = vector.load %arg4[%c0_225, %c0_226] : memref<1x512xf32, #tpu.memory_space<vmem>>, vector<1x128xf32>
    %450 = vector.broadcast %449 : vector<1x128xf32> to vector<8x128xf32>
    %451 = arith.addf %448, %450 : vector<8x128xf32>
    %c0_227 = arith.constant 0 : index
    %c0_228 = arith.constant 0 : index
    %452 = vector.load %arg2[%c0_227, %c0_228] : memref<128x512xbf16, #tpu.memory_space<vmem>>, vector<128x128xbf16>
    %cst_229 = arith.constant dense<0.000000e+00> : vector<8x128xf32>
    %453 = tpu.matmul %444, %452, %cst_229 {dimension_numbers = #tpu.dot_dimension_numbers<[1], [0], [0], [1], [0, 0, 1, 1], [], []>} : vector<8x128xbf16>, vector<128x128xbf16>, vector<8x128xf32> -> vector<8x128xf32>
    %454 = arith.addf %451, %453 : vector<8x128xf32>
    %455 = arith.negf %454 : vector<8x128xf32>
    %456 = math.exp %455 : vector<8x128xf32>
    %cst_230 = arith.constant 1.000000e+00 : f32
    %457 = vector.broadcast %cst_230 : f32 to vector<8x128xf32>
    %458 = arith.addf %457, %456 : vector<8x128xf32>
    %459 = arith.divf %457, %458 : vector<8x128xf32>
    %c0_231 = arith.constant 0 : index
    %c128_232 = arith.constant 128 : index
    %460 = vector.load %arg3[%c0_231, %c128_232] : memref<1x512xf32, #tpu.memory_space<vmem>>, vector<1x128xf32>
    %461 = vector.broadcast %443 : vector<8x1xf32> to vector<8x128xf32>
    %462 = vector.broadcast %460 : vector<1x128xf32> to vector<8x128xf32>
    %463 = arith.mulf %461, %462 : vector<8x128xf32>
    %c0_233 = arith.constant 0 : index
    %c128_234 = arith.constant 128 : index
    %464 = vector.load %arg4[%c0_233, %c128_234] : memref<1x512xf32, #tpu.memory_space<vmem>>, vector<1x128xf32>
    %465 = vector.broadcast %464 : vector<1x128xf32> to vector<8x128xf32>
    %466 = arith.addf %463, %465 : vector<8x128xf32>
    %c0_235 = arith.constant 0 : index
    %c128_236 = arith.constant 128 : index
    %467 = vector.load %arg2[%c0_235, %c128_236] : memref<128x512xbf16, #tpu.memory_space<vmem>>, vector<128x128xbf16>
    %cst_237 = arith.constant dense<0.000000e+00> : vector<8x128xf32>
    %468 = tpu.matmul %444, %467, %cst_237 {dimension_numbers = #tpu.dot_dimension_numbers<[1], [0], [0], [1], [0, 0, 1, 1], [], []>} : vector<8x128xbf16>, vector<128x128xbf16>, vector<8x128xf32> -> vector<8x128xf32>
    %469 = arith.addf %466, %468 : vector<8x128xf32>
    %470 = arith.negf %469 : vector<8x128xf32>
    %471 = math.exp %470 : vector<8x128xf32>
    %cst_238 = arith.constant 1.000000e+00 : f32
    %472 = vector.broadcast %cst_238 : f32 to vector<8x128xf32>
    %473 = arith.addf %472, %471 : vector<8x128xf32>
    %474 = arith.divf %472, %473 : vector<8x128xf32>
    %c0_239 = arith.constant 0 : index
    %c256_240 = arith.constant 256 : index
    %475 = vector.load %arg3[%c0_239, %c256_240] : memref<1x512xf32, #tpu.memory_space<vmem>>, vector<1x128xf32>
    %476 = vector.broadcast %443 : vector<8x1xf32> to vector<8x128xf32>
    %477 = vector.broadcast %475 : vector<1x128xf32> to vector<8x128xf32>
    %478 = arith.mulf %476, %477 : vector<8x128xf32>
    %c0_241 = arith.constant 0 : index
    %c256_242 = arith.constant 256 : index
    %479 = vector.load %arg4[%c0_241, %c256_242] : memref<1x512xf32, #tpu.memory_space<vmem>>, vector<1x128xf32>
    %480 = vector.broadcast %479 : vector<1x128xf32> to vector<8x128xf32>
    %481 = arith.addf %478, %480 : vector<8x128xf32>
    %c0_243 = arith.constant 0 : index
    %c256_244 = arith.constant 256 : index
    %482 = vector.load %arg2[%c0_243, %c256_244] : memref<128x512xbf16, #tpu.memory_space<vmem>>, vector<128x128xbf16>
    %cst_245 = arith.constant dense<0.000000e+00> : vector<8x128xf32>
    %483 = tpu.matmul %444, %482, %cst_245 {dimension_numbers = #tpu.dot_dimension_numbers<[1], [0], [0], [1], [0, 0, 1, 1], [], []>} : vector<8x128xbf16>, vector<128x128xbf16>, vector<8x128xf32> -> vector<8x128xf32>
    %484 = arith.addf %481, %483 : vector<8x128xf32>
    %485 = math.tanh %484 : vector<8x128xf32>
    %c0_246 = arith.constant 0 : index
    %c384_247 = arith.constant 384 : index
    %486 = vector.load %arg3[%c0_246, %c384_247] : memref<1x512xf32, #tpu.memory_space<vmem>>, vector<1x128xf32>
    %487 = vector.broadcast %443 : vector<8x1xf32> to vector<8x128xf32>
    %488 = vector.broadcast %486 : vector<1x128xf32> to vector<8x128xf32>
    %489 = arith.mulf %487, %488 : vector<8x128xf32>
    %c0_248 = arith.constant 0 : index
    %c384_249 = arith.constant 384 : index
    %490 = vector.load %arg4[%c0_248, %c384_249] : memref<1x512xf32, #tpu.memory_space<vmem>>, vector<1x128xf32>
    %491 = vector.broadcast %490 : vector<1x128xf32> to vector<8x128xf32>
    %492 = arith.addf %489, %491 : vector<8x128xf32>
    %c0_250 = arith.constant 0 : index
    %c384_251 = arith.constant 384 : index
    %493 = vector.load %arg2[%c0_250, %c384_251] : memref<128x512xbf16, #tpu.memory_space<vmem>>, vector<128x128xbf16>
    %cst_252 = arith.constant dense<0.000000e+00> : vector<8x128xf32>
    %494 = tpu.matmul %444, %493, %cst_252 {dimension_numbers = #tpu.dot_dimension_numbers<[1], [0], [0], [1], [0, 0, 1, 1], [], []>} : vector<8x128xbf16>, vector<128x128xbf16>, vector<8x128xf32> -> vector<8x128xf32>
    %495 = arith.addf %492, %494 : vector<8x128xf32>
    %496 = arith.negf %495 : vector<8x128xf32>
    %497 = math.exp %496 : vector<8x128xf32>
    %cst_253 = arith.constant 1.000000e+00 : f32
    %498 = vector.broadcast %cst_253 : f32 to vector<8x128xf32>
    %499 = arith.addf %498, %497 : vector<8x128xf32>
    %500 = arith.divf %498, %499 : vector<8x128xf32>
    %501 = arith.mulf %474, %440 : vector<8x128xf32>
    %502 = arith.mulf %459, %485 : vector<8x128xf32>
    %503 = arith.addf %501, %502 : vector<8x128xf32>
    %504 = math.tanh %503 : vector<8x128xf32>
    %505 = arith.mulf %500, %504 : vector<8x128xf32>
    %c0_254 = arith.constant 0 : index
    %c0_255 = arith.constant 0 : index
    %506 = vector.load %arg5[%c0_254, %c0_255] : memref<1x128xf32, #tpu.memory_space<vmem>>, vector<1x128xf32>
    %507 = vector.broadcast %506 : vector<1x128xf32> to vector<8x128xf32>
    %508 = arith.mulf %505, %507 : vector<8x128xf32>
    %cst_256 = arith.constant dense<0.000000e+00> : vector<8xf32>
    %509 = vector.multi_reduction <add>, %508, %cst_256 [1] : vector<8x128xf32> to vector<8xf32>
    %510 = vector.shape_cast %509 : vector<8xf32> to vector<8x1xf32>
    %c0_257 = arith.constant 0 : index
    %511 = memref.load %arg6[%c0_257] : memref<1xf32, #tpu.memory_space<smem>>
    %512 = vector.broadcast %511 : f32 to vector<8x1xf32>
    %513 = arith.addf %510, %512 : vector<8x1xf32>
    %514 = vector.shape_cast %513 : vector<8x1xf32> to vector<8x1xf32>
    %515 = vector.broadcast %514 : vector<8x1xf32> to vector<8x128xf32>
    %c0_258 = arith.constant 0 : index
    %c0_259 = arith.constant 0 : index
    %516 = vector.load %arg7[%c0_258, %c0_259] : memref<8x128xf32, #tpu.memory_space<vmem>>, vector<8x128xf32>
    tpu.vector_store %arg7[%c0_258, %c0_259], %515 {strides = array<i32>} : memref<8x128xf32, #tpu.memory_space<vmem>>, vector<8x128xf32>,
    return
  }
  func.func @transform_0(%arg0: i32) -> (i32, i32) {
    %c0_i32 = arith.constant 0 : i32
    %c0_i32_0 = arith.constant 0 : i32
    return %arg0, %c0_i32 : i32, i32
  }
  func.func @transform_1(%arg0: i32) -> (i32, i32) {
    %c0_i32 = arith.constant 0 : i32
    %c0_i32_0 = arith.constant 0 : i32
    %c0_i32_1 = arith.constant 0 : i32
    return %c0_i32, %c0_i32_0 : i32, i32
  }
  func.func @transform_2(%arg0: i32) -> (i32, i32) {
    %c0_i32 = arith.constant 0 : i32
    %c0_i32_0 = arith.constant 0 : i32
    %c0_i32_1 = arith.constant 0 : i32
    return %c0_i32, %c0_i32_0 : i32, i32
  }
  func.func @transform_3(%arg0: i32) -> (i32, i32) {
    %c0_i32 = arith.constant 0 : i32
    %c0_i32_0 = arith.constant 0 : i32
    %c0_i32_1 = arith.constant 0 : i32
    return %c0_i32, %c0_i32_0 : i32, i32
  }
  func.func @transform_4(%arg0: i32) -> (i32, i32) {
    %c0_i32 = arith.constant 0 : i32
    %c0_i32_0 = arith.constant 0 : i32
    %c0_i32_1 = arith.constant 0 : i32
    return %c0_i32, %c0_i32_0 : i32, i32
  }
  func.func @transform_5(%arg0: i32) -> i32 {
    %c0_i32 = arith.constant 0 : i32
    %c0_i32_0 = arith.constant 0 : i32
    return %c0_i32 : i32
  }
  func.func @transform_6(%arg0: i32) -> (i32, i32) {
    %c0_i32 = arith.constant 0 : i32
    %c0_i32_0 = arith.constant 0 : i32
    return %arg0, %c0_i32 : i32, i32
  }
}

</mosaic_0001>

<llo_original>
// kernel: tpu_custom_call.1
$region0: #{tpu_custom_call.1}
  #allocation0 [shape = 'u32[]', space=smem, size = 0x4, offset = 0x4, fixed_abs, tag = 'smem constant byte address 0x4 - core index']
  #allocation1 [shape = 'u32[144,128]{1,0:T(1,128)}', space=vmem, size = 0x12000, scoped, tag = 'internal scratch']
  #allocation2 [shape = 'f32[1]{0:T(128)S(6)}', space=smem, size = 0x200, scoped, tag = 'scoped memory for tpu_custom_call.1']
  %s0 = inlined_call_operand.hbm [shape: f32[8,8], index: 0, kind: input, shape index: {}]
  %s1 = inlined_call_operand.hbm [shape: bf16[128,512], index: 1, kind: input, shape index: {}]
  %s2 = inlined_call_operand.vmem [shape: f32[1,512], index: 2, kind: input, shape index: {}]
  %s3 = inlined_call_operand.hbm [shape: f32[1,512], index: 3, kind: input, shape index: {}]
  %s4 = inlined_call_operand.vmem [shape: f32[1,128], index: 4, kind: input, shape index: {}]
  %s5 = inlined_call_operand.<no memory space> [shape: f32[1], index: 5, kind: input, shape index: {}]
  %s6 = inlined_call_operand.hbm [shape: f32[8,128], index: 6, kind: output, shape index: {}]
  %s7 = sld [smem:[#allocation0]]
  $region46: #{tpu_custom_call.1} parent=0
    _
  %s9 = ssub.s32 1, %s7
  %s10 = scalar_select 0, %s9, %s7
  %11 = sst [smem:[#allocation2]] %s5
  $region1: #{tpu_custom_call.1} parent=0
    #allocation3 [shape = 'u8[4096]{0}', space=vmem, size = 0x1000, scoped, tag = 'input window, operand 0, single buffered']
    #allocation4 [shape = 's32[1]{0}', space=sflag, size = 0x4, scoped, tag = 'scoped memory for tpu_custom_call.1']
    #allocation5 [shape = 's32[1]{0}', space=sflag, size = 0x4, scoped, tag = 'scoped memory for tpu_custom_call.1']
    #allocation6 [shape = 'u8[131072]{0}', space=vmem, size = 0x20000, scoped, tag = 'input window, operand 1, single buffered']
    #allocation7 [shape = 's32[1]{0}', space=sflag, size = 0x4, scoped, tag = 'scoped memory for tpu_custom_call.1']
    #allocation8 [shape = 'u8[2048]{0}', space=vmem, size = 0x800, scoped, tag = 'input window, operand 3, single buffered']
    #allocation9 [shape = 'u8[4096]{0}', space=vmem, size = 0x1000, scoped, tag = 'output window, operand 0, single buffered']
    %12 = vsyncpa [#allocation4], 0
    %13 = vsyncpa [#allocation7], 0
    %14 = vsyncpa [#allocation5], 0
    // Predicated region
    $region2: #{tpu_custom_call.1} parent=1 // pred_check
      _
    $region3: #{tpu_custom_call.1} parent=1 // pred_check_branch
      %16 = sbr.rel (0) target = $region5
    $region4: #{tpu_custom_call.1} parent=1 // pred_region
      %s18 = ssub.s32 128, 128
      %19 = vsyncadd [#allocation4], %s18
      %s21 = sshll.u32 [#allocation3], 4
      %s22 = int_to_ptr.vmem [resolvable:$true] %s21
      %24 = dma.hbm_to_vmem [thread:$0]  %s0, 128, %s22, [#allocation4]
    $region5: #{tpu_custom_call.1} parent=1 // pred_fallthru
      _
    // Predicated region
    $region6: #{tpu_custom_call.1} parent=1 // pred_check
      _
    $region7: #{tpu_custom_call.1} parent=1 // pred_check_branch
      %26 = sbr.rel (0) target = $region9
    $region8: #{tpu_custom_call.1} parent=1 // pred_region
      %s28 = ssub.s32 4096, 4096
      %29 = vsyncadd [#allocation7], %s28
      %s30 = sshll.u32 [#allocation6], 4
      %s31 = int_to_ptr.vmem [resolvable:$true] %s30
      %36 = dma.hbm_to_vmem [thread:$0]  %s1, 4096, %s31, [#allocation7], 256, 256, 16
    $region9: #{tpu_custom_call.1} parent=1 // pred_fallthru
      _
    // Predicated region
    $region10: #{tpu_custom_call.1} parent=1 // pred_check
      _
    $region11: #{tpu_custom_call.1} parent=1 // pred_check_branch
      %38 = sbr.rel (0) target = $region13
    $region12: #{tpu_custom_call.1} parent=1 // pred_region
      _
    $region13: #{tpu_custom_call.1} parent=1 // pred_fallthru
      _
    // Predicated region
    $region14: #{tpu_custom_call.1} parent=1 // pred_check
      _
    $region15: #{tpu_custom_call.1} parent=1 // pred_check_branch
      %40 = sbr.rel (0) target = $region17
    $region16: #{tpu_custom_call.1} parent=1 // pred_region
      %s42 = ssub.s32 64, 64
      %43 = vsyncadd [#allocation7], %s42
      %s45 = sshll.u32 [#allocation8], 4
      %s46 = int_to_ptr.vmem [resolvable:$true] %s45
      %48 = dma.hbm_to_vmem [thread:$0]  %s3, 64, %s46, [#allocation7]
    $region17: #{tpu_custom_call.1} parent=1 // pred_fallthru
      _
    // Predicated region
    $region18: #{tpu_custom_call.1} parent=1 // pred_check
      _
    $region19: #{tpu_custom_call.1} parent=1 // pred_check_branch
      %50 = sbr.rel (0) target = $region21
    $region20: #{tpu_custom_call.1} parent=1 // pred_region
      _
    $region21: #{tpu_custom_call.1} parent=1 // pred_fallthru
      _
    // Predicated region
    $region22: #{tpu_custom_call.1} parent=1 // pred_check
      _
    $region23: #{tpu_custom_call.1} parent=1 // pred_check_branch
      %52 = sbr.rel (0) target = $region25
    $region24: #{tpu_custom_call.1} parent=1 // pred_region
      _
    $region25: #{tpu_custom_call.1} parent=1 // pred_fallthru
      _
    // Predicated region
    $region26: #{tpu_custom_call.1} parent=1 // pred_check
      _
    $region27: #{tpu_custom_call.1} parent=1 // pred_check_branch
      %54 = sbr.rel (0) target = $region29
    $region28: #{tpu_custom_call.1} parent=1 // pred_region
      %55 = dma.done [#allocation4], 128
    $region29: #{tpu_custom_call.1} parent=1 // pred_fallthru
      _
    // Predicated region
    $region30: #{tpu_custom_call.1} parent=1 // pred_check
      _
    $region31: #{tpu_custom_call.1} parent=1 // pred_check_branch
      %57 = sbr.rel (0) target = $region33
    $region32: #{tpu_custom_call.1} parent=1 // pred_region
      %58 = dma.done [#allocation7], 4096
    $region33: #{tpu_custom_call.1} parent=1 // pred_fallthru
      _
    // Predicated region
    $region34: #{tpu_custom_call.1} parent=1 // pred_check
      _
    $region35: #{tpu_custom_call.1} parent=1 // pred_check_branch
      %60 = sbr.rel (0) target = $region37
    $region36: #{tpu_custom_call.1} parent=1 // pred_region
      %61 = dma.done [#allocation7], 64
    $region37: #{tpu_custom_call.1} parent=1 // pred_fallthru
      _
    %v63 = vld [vmem:[#allocation3] sm:$0xff]
    %v64 = vld [vmem:[%s2] sm:$0x1]
    %66 = vset.pattern.permute.xlu0 0
    %67 = vperm.xlu0 %66, %v63
    %v68 = vpop.permute.xlu0 %67
    %v71 = vlaneseq
    %v72 = vshrl.u32 %v71, 7
    %v73 = vsub.s32 0, %v72
    %v74 = vrot.slane %v64, %v73
    %v76 = vmul.f32 %v68, %v74
    %v77 = vld [vmem:[#allocation8] sm:$0x1]
    %v79 = vlaneseq
    %v80 = vshrl.u32 %v79, 7
    %v81 = vsub.s32 0, %v80
    %v82 = vrot.slane %v77, %v81
    %v84 = vadd.f32 %v76, %v82
    %v85 = vld [vmem:[#allocation6] sm:$0xf]
    %v86 = vld [vmem:[#allocation6 + $0x10] sm:$0xf]
    %v87 = vld [vmem:[#allocation6 + $0x20] sm:$0xf]
    %v88 = vld [vmem:[#allocation6 + $0x30] sm:$0xf]
    %v89 = vld [vmem:[#allocation6 + $0x40] sm:$0xf]
    %v90 = vld [vmem:[#allocation6 + $0x50] sm:$0xf]
    %v91 = vld [vmem:[#allocation6 + $0x60] sm:$0xf]
    %v92 = vld [vmem:[#allocation6 + $0x70] sm:$0xf]
    %v93 = vld [vmem:[#allocation6 + $0x80] sm:$0xf]
    %v94 = vld [vmem:[#allocation6 + $0x90] sm:$0xf]
    %v95 = vld [vmem:[#allocation6 + $0xa0] sm:$0xf]
    %v96 = vld [vmem:[#allocation6 + $0xb0] sm:$0xf]
    %v97 = vld [vmem:[#allocation6 + $0xc0] sm:$0xf]
    %v98 = vld [vmem:[#allocation6 + $0xd0] sm:$0xf]
    %v99 = vld [vmem:[#allocation6 + $0xe0] sm:$0xf]
    %v100 = vld [vmem:[#allocation6 + $0xf0] sm:$0xf]
    %v117 = vunpack.c.l.b16 %v85
    %v118 = vunpack.c.l.b16 %v86
    %v119 = vunpack.c.l.b16 %v87
    %v120 = vunpack.c.l.b16 %v88
    %v121 = vunpack.c.l.b16 %v89
    %v122 = vunpack.c.l.b16 %v90
    %v123 = vunpack.c.l.b16 %v91
    %v124 = vunpack.c.l.b16 %v92
    %v125 = vunpack.c.l.b16 %v93
    %v126 = vunpack.c.l.b16 %v94
    %v127 = vunpack.c.l.b16 %v95
    %v128 = vunpack.c.l.b16 %v96
    %v129 = vunpack.c.l.b16 %v97
    %v130 = vunpack.c.l.b16 %v98
    %v131 = vunpack.c.l.b16 %v99
    %v132 = vunpack.c.l.b16 %v100
    %v133 = vpack.c.b16 %v118, %v117
    %v134 = vpack.c.b16 %v120, %v119
    %v135 = vpack.c.b16 %v122, %v121
    %v136 = vpack.c.b16 %v124, %v123
    %v137 = vpack.c.b16 %v126, %v125
    %v138 = vpack.c.b16 %v128, %v127
    %v139 = vpack.c.b16 %v130, %v129
    %v140 = vpack.c.b16 %v132, %v131
    %149 = vmatprep.subr.bf16.mxu0 0
    %150 = vmatpush1.bf16.msra.mxu0 %v140
    %151 = vmatprep.subr.bf16.mxu0 0
    %152 = vmatpush1.bf16.msra.mxu0 %v139
    %153 = vmatprep.subr.bf16.mxu0 0
    %154 = vmatpush1.bf16.msra.mxu0 %v138
    %155 = vmatprep.subr.bf16.mxu0 0
    %156 = vmatpush1.bf16.msra.mxu0 %v137
    %157 = vmatprep.subr.bf16.mxu0 0
    %158 = vmatpush1.bf16.msra.mxu0 %v136
    %159 = vmatprep.subr.bf16.mxu0 0
    %160 = vmatpush1.bf16.msra.mxu0 %v135
    %161 = vmatprep.subr.bf16.mxu0 0
    %162 = vmatpush1.bf16.msra.mxu0 %v134
    %163 = vmatprep.subr.bf16.mxu0 0
    %164 = vmatpush1.bf16.msra.mxu0 %v133
    %165 = vmatprep.subr.bf16.mxu0 0
    %166 = vmatpush2.bf16.msra.mxu0 0
    %167 = vmatprep.subr.bf16.mxu0 0
    %168 = vmatpush2.bf16.msra.mxu0 0
    %169 = vmatprep.subr.bf16.mxu0 0
    %170 = vmatpush2.bf16.msra.mxu0 0
    %171 = vmatprep.subr.bf16.mxu0 0
    %172 = vmatpush2.bf16.msra.mxu0 0
    %173 = vmatprep.subr.bf16.mxu0 0
    %174 = vmatpush2.bf16.msra.mxu0 0
    %175 = vmatprep.subr.bf16.mxu0 0
    %176 = vmatpush2.bf16.msra.mxu0 0
    %177 = vmatprep.subr.bf16.mxu0 0
    %178 = vmatpush2.bf16.msra.mxu0 0
    %179 = vmatprep.subr.bf16.mxu0 0
    %180 = vmatpush2.bf16.msra.mxu0 0
    %181 = vmatprep.mubr.bf16.mxu0 0
    %182 = vmatmul.mubr.bf16.gmra.mxu0 0
    %v183 = vpop.f32.mrf.mxu0
    %v184 = vadd.f32 0.0, %v183
    %v185 = vpop.f32.mrf.mxu0
    %v186 = vpop.f32.mrf.mxu0
    %v187 = vpop.f32.mrf.mxu0
    %188 = vdwg.mxu0
    %v189 = vadd.f32 %v84, %v184
    %v190 = vxor.u32 %v189, 2147483648
    %v191 = vmul.f32 %v190, 1.442695
    %v192 = vpow.pop %v191
    %v193 = vadd.f32 %v192, 1.0
    %v194 = vrcp.pop %v193
    %v195 = vmul.f32 1.0, %v194
    %v196 = vld [vmem:[%s2 + $0x1] sm:$0x1]
    %v198 = vlaneseq
    %v199 = vshrl.u32 %v198, 7
    %v200 = vsub.s32 0, %v199
    %v201 = vrot.slane %v196, %v200
    %v203 = vmul.f32 %v68, %v201
    %v204 = vld [vmem:[#allocation8 + $0x1] sm:$0x1]
    %v206 = vlaneseq
    %v207 = vshrl.u32 %v206, 7
    %v208 = vsub.s32 0, %v207
    %v209 = vrot.slane %v204, %v208
    %v211 = vadd.f32 %v203, %v209
    %v212 = vld [vmem:[#allocation6 + $0x4] sm:$0xf]
    %v213 = vld [vmem:[#allocation6 + $0x14] sm:$0xf]
    %v214 = vld [vmem:[#allocation6 + $0x24] sm:$0xf]
    %v215 = vld [vmem:[#allocation6 + $0x34] sm:$0xf]
    %v216 = vld [vmem:[#allocation6 + $0x44] sm:$0xf]
    %v217 = vld [vmem:[#allocation6 + $0x54] sm:$0xf]
    %v218 = vld [vmem:[#allocation6 + $0x64] sm:$0xf]
    %v219 = vld [vmem:[#allocation6 + $0x74] sm:$0xf]
    %v220 = vld [vmem:[#allocation6 + $0x84] sm:$0xf]
    %v221 = vld [vmem:[#allocation6 + $0x94] sm:$0xf]
    %v222 = vld [vmem:[#allocation6 + $0xa4] sm:$0xf]
    %v223 = vld [vmem:[#allocation6 + $0xb4] sm:$0xf]
    %v224 = vld [vmem:[#allocation6 + $0xc4] sm:$0xf]
    %v225 = vld [vmem:[#allocation6 + $0xd4] sm:$0xf]
    %v226 = vld [vmem:[#allocation6 + $0xe4] sm:$0xf]
    %v227 = vld [vmem:[#allocation6 + $0xf4] sm:$0xf]
    %v244 = vunpack.c.l.b16 %v212
    %v245 = vunpack.c.l.b16 %v213
    %v246 = vunpack.c.l.b16 %v214
    %v247 = vunpack.c.l.b16 %v215
    %v248 = vunpack.c.l.b16 %v216
    %v249 = vunpack.c.l.b16 %v217
    %v250 = vunpack.c.l.b16 %v218
    %v251 = vunpack.c.l.b16 %v219
    %v252 = vunpack.c.l.b16 %v220
    %v253 = vunpack.c.l.b16 %v221
    %v254 = vunpack.c.l.b16 %v222
    %v255 = vunpack.c.l.b16 %v223
    %v256 = vunpack.c.l.b16 %v224
    %v257 = vunpack.c.l.b16 %v225
    %v258 = vunpack.c.l.b16 %v226
    %v259 = vunpack.c.l.b16 %v227
    %v260 = vpack.c.b16 %v245, %v244
    %v261 = vpack.c.b16 %v247, %v246
    %v262 = vpack.c.b16 %v249, %v248
    %v263 = vpack.c.b16 %v251, %v250
    %v264 = vpack.c.b16 %v253, %v252
    %v265 = vpack.c.b16 %v255, %v254
    %v266 = vpack.c.b16 %v257, %v256
    %v267 = vpack.c.b16 %v259, %v258
    %276 = vmatprep.subr.bf16.mxu0 0
    %277 = vmatpush1.bf16.msra.mxu0 %v267
    %278 = vmatprep.subr.bf16.mxu0 0
    %279 = vmatpush1.bf16.msra.mxu0 %v266
    %280 = vmatprep.subr.bf16.mxu0 0
    %281 = vmatpush1.bf16.msra.mxu0 %v265
    %282 = vmatprep.subr.bf16.mxu0 0
    %283 = vmatpush1.bf16.msra.mxu0 %v264
    %284 = vmatprep.subr.bf16.mxu0 0
    %285 = vmatpush1.bf16.msra.mxu0 %v263
    %286 = vmatprep.subr.bf16.mxu0 0
    %287 = vmatpush1.bf16.msra.mxu0 %v262
    %288 = vmatprep.subr.bf16.mxu0 0
    %289 = vmatpush1.bf16.msra.mxu0 %v261
    %290 = vmatprep.subr.bf16.mxu0 0
    %291 = vmatpush1.bf16.msra.mxu0 %v260
    %292 = vmatprep.subr.bf16.mxu0 0
    %293 = vmatpush2.bf16.msra.mxu0 0
    %294 = vmatprep.subr.bf16.mxu0 0
    %295 = vmatpush2.bf16.msra.mxu0 0
    %296 = vmatprep.subr.bf16.mxu0 0
    %297 = vmatpush2.bf16.msra.mxu0 0
    %298 = vmatprep.subr.bf16.mxu0 0
    %299 = vmatpush2.bf16.msra.mxu0 0
    %300 = vmatprep.subr.bf16.mxu0 0
    %301 = vmatpush2.bf16.msra.mxu0 0
    %302 = vmatprep.subr.bf16.mxu0 0
    %303 = vmatpush2.bf16.msra.mxu0 0
    %304 = vmatprep.subr.bf16.mxu0 0
    %305 = vmatpush2.bf16.msra.mxu0 0
    %306 = vmatprep.subr.bf16.mxu0 0
    %307 = vmatpush2.bf16.msra.mxu0 0
    %308 = vmatprep.mubr.bf16.mxu0 0
    %309 = vmatmul.mubr.bf16.gmra.mxu0 0
    %v310 = vpop.f32.mrf.mxu0
    %v311 = vadd.f32 0.0, %v310
    %v312 = vpop.f32.mrf.mxu0
    %v313 = vpop.f32.mrf.mxu0
    %v314 = vpop.f32.mrf.mxu0
    %315 = vdwg.mxu0
    %v316 = vadd.f32 %v211, %v311
    %v317 = vxor.u32 %v316, 2147483648
    %v318 = vmul.f32 %v317, 1.442695
    %v319 = vpow.pop %v318
    %v320 = vadd.f32 %v319, 1.0
    %v321 = vrcp.pop %v320
    %v322 = vmul.f32 1.0, %v321
    %v323 = vld [vmem:[%s2 + $0x2] sm:$0x1]
    %v325 = vlaneseq
    %v326 = vshrl.u32 %v325, 7
    %v327 = vsub.s32 0, %v326
    %v328 = vrot.slane %v323, %v327
    %v330 = vmul.f32 %v68, %v328
    %v331 = vld [vmem:[#allocation8 + $0x2] sm:$0x1]
    %v333 = vlaneseq
    %v334 = vshrl.u32 %v333, 7
    %v335 = vsub.s32 0, %v334
    %v336 = vrot.slane %v331, %v335
    %v338 = vadd.f32 %v330, %v336
    %v339 = vld [vmem:[#allocation6 + $0x8] sm:$0xf]
    %v340 = vld [vmem:[#allocation6 + $0x18] sm:$0xf]
    %v341 = vld [vmem:[#allocation6 + $0x28] sm:$0xf]
    %v342 = vld [vmem:[#allocation6 + $0x38] sm:$0xf]
    %v343 = vld [vmem:[#allocation6 + $0x48] sm:$0xf]
    %v344 = vld [vmem:[#allocation6 + $0x58] sm:$0xf]
    %v345 = vld [vmem:[#allocation6 + $0x68] sm:$0xf]
    %v346 = vld [vmem:[#allocation6 + $0x78] sm:$0xf]
    %v347 = vld [vmem:[#allocation6 + $0x88] sm:$0xf]
    %v348 = vld [vmem:[#allocation6 + $0x98] sm:$0xf]
    %v349 = vld [vmem:[#allocation6 + $0xa8] sm:$0xf]
    %v350 = vld [vmem:[#allocation6 + $0xb8] sm:$0xf]
    %v351 = vld [vmem:[#allocation6 + $0xc8] sm:$0xf]
    %v352 = vld [vmem:[#allocation6 + $0xd8] sm:$0xf]
    %v353 = vld [vmem:[#allocation6 + $0xe8] sm:$0xf]
    %v354 = vld [vmem:[#allocation6 + $0xf8] sm:$0xf]
    %v371 = vunpack.c.l.b16 %v339
    %v372 = vunpack.c.l.b16 %v340
    %v373 = vunpack.c.l.b16 %v341
    %v374 = vunpack.c.l.b16 %v342
    %v375 = vunpack.c.l.b16 %v343
    %v376 = vunpack.c.l.b16 %v344
    %v377 = vunpack.c.l.b16 %v345
    %v378 = vunpack.c.l.b16 %v346
    %v379 = vunpack.c.l.b16 %v347
    %v380 = vunpack.c.l.b16 %v348
    %v381 = vunpack.c.l.b16 %v349
    %v382 = vunpack.c.l.b16 %v350
    %v383 = vunpack.c.l.b16 %v351
    %v384 = vunpack.c.l.b16 %v352
    %v385 = vunpack.c.l.b16 %v353
    %v386 = vunpack.c.l.b16 %v354
    %v387 = vpack.c.b16 %v372, %v371
    %v388 = vpack.c.b16 %v374, %v373
    %v389 = vpack.c.b16 %v376, %v375
    %v390 = vpack.c.b16 %v378, %v377
    %v391 = vpack.c.b16 %v380, %v379
    %v392 = vpack.c.b16 %v382, %v381
    %v393 = vpack.c.b16 %v384, %v383
    %v394 = vpack.c.b16 %v386, %v385
    %403 = vmatprep.subr.bf16.mxu0 0
    %404 = vmatpush1.bf16.msra.mxu0 %v394
    %405 = vmatprep.subr.bf16.mxu0 0
    %406 = vmatpush1.bf16.msra.mxu0 %v393
    %407 = vmatprep.subr.bf16.mxu0 0
    %408 = vmatpush1.bf16.msra.mxu0 %v392
    %409 = vmatprep.subr.bf16.mxu0 0
    %410 = vmatpush1.bf16.msra.mxu0 %v391
    %411 = vmatprep.subr.bf16.mxu0 0
    %412 = vmatpush1.bf16.msra.mxu0 %v390
    %413 = vmatprep.subr.bf16.mxu0 0
    %414 = vmatpush1.bf16.msra.mxu0 %v389
    %415 = vmatprep.subr.bf16.mxu0 0
    %416 = vmatpush1.bf16.msra.mxu0 %v388
    %417 = vmatprep.subr.bf16.mxu0 0
    %418 = vmatpush1.bf16.msra.mxu0 %v387
    %419 = vmatprep.subr.bf16.mxu0 0
    %420 = vmatpush2.bf16.msra.mxu0 0
    %421 = vmatprep.subr.bf16.mxu0 0
    %422 = vmatpush2.bf16.msra.mxu0 0
    %423 = vmatprep.subr.bf16.mxu0 0
    %424 = vmatpush2.bf16.msra.mxu0 0
    %425 = vmatprep.subr.bf16.mxu0 0
    %426 = vmatpush2.bf16.msra.mxu0 0
    %427 = vmatprep.subr.bf16.mxu0 0
    %428 = vmatpush2.bf16.msra.mxu0 0
    %429 = vmatprep.subr.bf16.mxu0 0
    %430 = vmatpush2.bf16.msra.mxu0 0
    %431 = vmatprep.subr.bf16.mxu0 0
    %432 = vmatpush2.bf16.msra.mxu0 0
    %433 = vmatprep.subr.bf16.mxu0 0
    %434 = vmatpush2.bf16.msra.mxu0 0
    %435 = vmatprep.mubr.bf16.mxu0 0
    %436 = vmatmul.mubr.bf16.gmra.mxu0 0
    %v437 = vpop.f32.mrf.mxu0
    %v438 = vadd.f32 0.0, %v437
    %v439 = vpop.f32.mrf.mxu0
    %v440 = vpop.f32.mrf.mxu0
    %v441 = vpop.f32.mrf.mxu0
    %442 = vdwg.mxu0
    %v443 = vadd.f32 %v338, %v438
    %v444 = vtanh.pop %v443
    %v445 = vld [vmem:[%s2 + $0x3] sm:$0x1]
    %v447 = vlaneseq
    %v448 = vshrl.u32 %v447, 7
    %v449 = vsub.s32 0, %v448
    %v450 = vrot.slane %v445, %v449
    %v452 = vmul.f32 %v68, %v450
    %v453 = vld [vmem:[#allocation8 + $0x3] sm:$0x1]
    %v455 = vlaneseq
    %v456 = vshrl.u32 %v455, 7
    %v457 = vsub.s32 0, %v456
    %v458 = vrot.slane %v453, %v457
    %v460 = vadd.f32 %v452, %v458
    %v461 = vld [vmem:[#allocation6 + $0xc] sm:$0xf]
    %v462 = vld [vmem:[#allocation6 + $0x1c] sm:$0xf]
    %v463 = vld [vmem:[#allocation6 + $0x2c] sm:$0xf]
    %v464 = vld [vmem:[#allocation6 + $0x3c] sm:$0xf]
    %v465 = vld [vmem:[#allocation6 + $0x4c] sm:$0xf]
    %v466 = vld [vmem:[#allocation6 + $0x5c] sm:$0xf]
    %v467 = vld [vmem:[#allocation6 + $0x6c] sm:$0xf]
    %v468 = vld [vmem:[#allocation6 + $0x7c] sm:$0xf]
    %v469 = vld [vmem:[#allocation6 + $0x8c] sm:$0xf]
    %v470 = vld [vmem:[#allocation6 + $0x9c] sm:$0xf]
    %v471 = vld [vmem:[#allocation6 + $0xac] sm:$0xf]
    %v472 = vld [vmem:[#allocation6 + $0xbc] sm:$0xf]
    %v473 = vld [vmem:[#allocation6 + $0xcc] sm:$0xf]
    %v474 = vld [vmem:[#allocation6 + $0xdc] sm:$0xf]
    %v475 = vld [vmem:[#allocation6 + $0xec] sm:$0xf]
    %v476 = vld [vmem:[#allocation6 + $0xfc] sm:$0xf]
    %v493 = vunpack.c.l.b16 %v461
    %v494 = vunpack.c.l.b16 %v462
    %v495 = vunpack.c.l.b16 %v463
    %v496 = vunpack.c.l.b16 %v464
    %v497 = vunpack.c.l.b16 %v465
    %v498 = vunpack.c.l.b16 %v466
    %v499 = vunpack.c.l.b16 %v467
    %v500 = vunpack.c.l.b16 %v468
    %v501 = vunpack.c.l.b16 %v469
    %v502 = vunpack.c.l.b16 %v470
    %v503 = vunpack.c.l.b16 %v471
    %v504 = vunpack.c.l.b16 %v472
    %v505 = vunpack.c.l.b16 %v473
    %v506 = vunpack.c.l.b16 %v474
    %v507 = vunpack.c.l.b16 %v475
    %v508 = vunpack.c.l.b16 %v476
    %v509 = vpack.c.b16 %v494, %v493
    %v510 = vpack.c.b16 %v496, %v495
    %v511 = vpack.c.b16 %v498, %v497
    %v512 = vpack.c.b16 %v500, %v499
    %v513 = vpack.c.b16 %v502, %v501
    %v514 = vpack.c.b16 %v504, %v503
    %v515 = vpack.c.b16 %v506, %v505
    %v516 = vpack.c.b16 %v508, %v507
    %525 = vmatprep.subr.bf16.mxu0 0
    %526 = vmatpush1.bf16.msra.mxu0 %v516
    %527 = vmatprep.subr.bf16.mxu0 0
    %528 = vmatpush1.bf16.msra.mxu0 %v515
    %529 = vmatprep.subr.bf16.mxu0 0
    %530 = vmatpush1.bf16.msra.mxu0 %v514
    %531 = vmatprep.subr.bf16.mxu0 0
    %532 = vmatpush1.bf16.msra.mxu0 %v513
    %533 = vmatprep.subr.bf16.mxu0 0
    %534 = vmatpush1.bf16.msra.mxu0 %v512
    %535 = vmatprep.subr.bf16.mxu0 0
    %536 = vmatpush1.bf16.msra.mxu0 %v511
    %537 = vmatprep.subr.bf16.mxu0 0
    %538 = vmatpush1.bf16.msra.mxu0 %v510
    %539 = vmatprep.subr.bf16.mxu0 0
    %540 = vmatpush1.bf16.msra.mxu0 %v509
    %541 = vmatprep.subr.bf16.mxu0 0
    %542 = vmatpush2.bf16.msra.mxu0 0
    %543 = vmatprep.subr.bf16.mxu0 0
    %544 = vmatpush2.bf16.msra.mxu0 0
    %545 = vmatprep.subr.bf16.mxu0 0
    %546 = vmatpush2.bf16.msra.mxu0 0
    %547 = vmatprep.subr.bf16.mxu0 0
    %548 = vmatpush2.bf16.msra.mxu0 0
    %549 = vmatprep.subr.bf16.mxu0 0
    %550 = vmatpush2.bf16.msra.mxu0 0
    %551 = vmatprep.subr.bf16.mxu0 0
    %552 = vmatpush2.bf16.msra.mxu0 0
    %553 = vmatprep.subr.bf16.mxu0 0
    %554 = vmatpush2.bf16.msra.mxu0 0
    %555 = vmatprep.subr.bf16.mxu0 0
    %556 = vmatpush2.bf16.msra.mxu0 0
    %557 = vmatprep.mubr.bf16.mxu0 0
    %558 = vmatmul.mubr.bf16.gmra.mxu0 0
    %v559 = vpop.f32.mrf.mxu0
    %v560 = vadd.f32 0.0, %v559
    %v561 = vpop.f32.mrf.mxu0
    %v562 = vpop.f32.mrf.mxu0
    %v563 = vpop.f32.mrf.mxu0
    %564 = vdwg.mxu0
    %v565 = vadd.f32 %v460, %v560
    %v566 = vxor.u32 %v565, 2147483648
    %v567 = vmul.f32 %v566, 1.442695
    %v568 = vpow.pop %v567
    %v569 = vadd.f32 %v568, 1.0
    %v570 = vrcp.pop %v569
    %v571 = vmul.f32 1.0, %v570
    %v572 = vmul.f32 %v322, 0.0
    %v573 = vmul.f32 %v195, %v444
    %v574 = vadd.f32 %v572, %v573
    %v575 = vtanh.pop %v574
    %v576 = vmul.f32 %v571, %v575
    %v577 = vpack.c.bf16 %v576, %v576
    %578 = vset.pattern.permute.xlu0 1
    %579 = vperm.xlu0 %578, %v63
    %v580 = vpop.permute.xlu0 %579
    %v582 = vmul.f32 %v580, %v74
    %v583 = vadd.f32 %v582, %v82
    %584 = vmatprep.subr.bf16.mxu0 0
    %585 = vmatpush1.bf16.msra.mxu0 %v140
    %586 = vmatprep.subr.bf16.mxu0 0
    %587 = vmatpush1.bf16.msra.mxu0 %v139
    %588 = vmatprep.subr.bf16.mxu0 0
    %589 = vmatpush1.bf16.msra.mxu0 %v138
    %590 = vmatprep.subr.bf16.mxu0 0
    %591 = vmatpush1.bf16.msra.mxu0 %v137
    %592 = vmatprep.subr.bf16.mxu0 0
    %593 = vmatpush1.bf16.msra.mxu0 %v136
    %594 = vmatprep.subr.bf16.mxu0 0
    %595 = vmatpush1.bf16.msra.mxu0 %v135
    %596 = vmatprep.subr.bf16.mxu0 0
    %597 = vmatpush1.bf16.msra.mxu0 %v134
    %598 = vmatprep.subr.bf16.mxu0 0
    %599 = vmatpush1.bf16.msra.mxu0 %v133
    %600 = vmatprep.subr.bf16.mxu0 0
    %601 = vmatpush2.bf16.msra.mxu0 0
    %602 = vmatprep.subr.bf16.mxu0 0
    %603 = vmatpush2.bf16.msra.mxu0 0
    %604 = vmatprep.subr.bf16.mxu0 0
    %605 = vmatpush2.bf16.msra.mxu0 0
    %606 = vmatprep.subr.bf16.mxu0 0
    %607 = vmatpush2.bf16.msra.mxu0 0
    %608 = vmatprep.subr.bf16.mxu0 0
    %609 = vmatpush2.bf16.msra.mxu0 0
    %610 = vmatprep.subr.bf16.mxu0 0
    %611 = vmatpush2.bf16.msra.mxu0 0
    %612 = vmatprep.subr.bf16.mxu0 0
    %613 = vmatpush2.bf16.msra.mxu0 0
    %614 = vmatprep.subr.bf16.mxu0 0
    %615 = vmatpush2.bf16.msra.mxu0 0
    %616 = vmatprep.mubr.bf16.mxu0 0
    %617 = vmatmul.mubr.bf16.gmra.mxu0 %v577
    %v618 = vpop.f32.mrf.mxu0
    %v619 = vadd.f32 0.0, %v618
    %v620 = vpop.f32.mrf.mxu0
    %v621 = vpop.f32.mrf.mxu0
    %v622 = vpop.f32.mrf.mxu0
    %623 = vdwg.mxu0
    %v624 = vadd.f32 %v583, %v619
    %v625 = vxor.u32 %v624, 2147483648
    %v626 = vmul.f32 %v625, 1.442695
    %v627 = vpow.pop %v626
    %v628 = vadd.f32 %v627, 1.0
    %v629 = vrcp.pop %v628
    %v630 = vmul.f32 1.0, %v629
    %v631 = vmul.f32 %v580, %v201
    %v632 = vadd.f32 %v631, %v209
    %633 = vmatprep.subr.bf16.mxu0 0
    %634 = vmatpush1.bf16.msra.mxu0 %v267
    %635 = vmatprep.subr.bf16.mxu0 0
    %636 = vmatpush1.bf16.msra.mxu0 %v266
    %637 = vmatprep.subr.bf16.mxu0 0
    %638 = vmatpush1.bf16.msra.mxu0 %v265
    %639 = vmatprep.subr.bf16.mxu0 0
    %640 = vmatpush1.bf16.msra.mxu0 %v264
    %641 = vmatprep.subr.bf16.mxu0 0
    %642 = vmatpush1.bf16.msra.mxu0 %v263
    %643 = vmatprep.subr.bf16.mxu0 0
    %644 = vmatpush1.bf16.msra.mxu0 %v262
    %645 = vmatprep.subr.bf16.mxu0 0
    %646 = vmatpush1.bf16.msra.mxu0 %v261
    %647 = vmatprep.subr.bf16.mxu0 0
    %648 = vmatpush1.bf16.msra.mxu0 %v260
    %649 = vmatprep.subr.bf16.mxu0 0
    %650 = vmatpush2.bf16.msra.mxu0 0
    %651 = vmatprep.subr.bf16.mxu0 0
    %652 = vmatpush2.bf16.msra.mxu0 0
    %653 = vmatprep.subr.bf16.mxu0 0
    %654 = vmatpush2.bf16.msra.mxu0 0
    %655 = vmatprep.subr.bf16.mxu0 0
    %656 = vmatpush2.bf16.msra.mxu0 0
    %657 = vmatprep.subr.bf16.mxu0 0
    %658 = vmatpush2.bf16.msra.mxu0 0
    %659 = vmatprep.subr.bf16.mxu0 0
    %660 = vmatpush2.bf16.msra.mxu0 0
    %661 = vmatprep.subr.bf16.mxu0 0
    %662 = vmatpush2.bf16.msra.mxu0 0
    %663 = vmatprep.subr.bf16.mxu0 0
    %664 = vmatpush2.bf16.msra.mxu0 0
    %665 = vmatprep.mubr.bf16.mxu0 0
    %666 = vmatmul.mubr.bf16.gmra.mxu0 %v577
    %v667 = vpop.f32.mrf.mxu0
    %v668 = vadd.f32 0.0, %v667
    %v669 = vpop.f32.mrf.mxu0
    %v670 = vpop.f32.mrf.mxu0
    %v671 = vpop.f32.mrf.mxu0
    %672 = vdwg.mxu0
    %v673 = vadd.f32 %v632, %v668
    %v674 = vxor.u32 %v673, 2147483648
    %v675 = vmul.f32 %v674, 1.442695
    %v676 = vpow.pop %v675
    %v677 = vadd.f32 %v676, 1.0
    %v678 = vrcp.pop %v677
    %v679 = vmul.f32 1.0, %v678
    %v680 = vmul.f32 %v580, %v328
    %v681 = vadd.f32 %v680, %v336
    %682 = vmatprep.subr.bf16.mxu0 0
    %683 = vmatpush1.bf16.msra.mxu0 %v394
    %684 = vmatprep.subr.bf16.mxu0 0
    %685 = vmatpush1.bf16.msra.mxu0 %v393
    %686 = vmatprep.subr.bf16.mxu0 0
    %687 = vmatpush1.bf16.msra.mxu0 %v392
    %688 = vmatprep.subr.bf16.mxu0 0
    %689 = vmatpush1.bf16.msra.mxu0 %v391
    %690 = vmatprep.subr.bf16.mxu0 0
    %691 = vmatpush1.bf16.msra.mxu0 %v390
    %692 = vmatprep.subr.bf16.mxu0 0
    %693 = vmatpush1.bf16.msra.mxu0 %v389
    %694 = vmatprep.subr.bf16.mxu0 0
    %695 = vmatpush1.bf16.msra.mxu0 %v388
    %696 = vmatprep.subr.bf16.mxu0 0
    %697 = vmatpush1.bf16.msra.mxu0 %v387
    %698 = vmatprep.subr.bf16.mxu0 0
    %699 = vmatpush2.bf16.msra.mxu0 0
    %700 = vmatprep.subr.bf16.mxu0 0
    %701 = vmatpush2.bf16.msra.mxu0 0
    %702 = vmatprep.subr.bf16.mxu0 0
    %703 = vmatpush2.bf16.msra.mxu0 0
    %704 = vmatprep.subr.bf16.mxu0 0
    %705 = vmatpush2.bf16.msra.mxu0 0
    %706 = vmatprep.subr.bf16.mxu0 0
    %707 = vmatpush2.bf16.msra.mxu0 0
    %708 = vmatprep.subr.bf16.mxu0 0
    %709 = vmatpush2.bf16.msra.mxu0 0
    %710 = vmatprep.subr.bf16.mxu0 0
    %711 = vmatpush2.bf16.msra.mxu0 0
    %712 = vmatprep.subr.bf16.mxu0 0
    %713 = vmatpush2.bf16.msra.mxu0 0
    %714 = vmatprep.mubr.bf16.mxu0 0
    %715 = vmatmul.mubr.bf16.gmra.mxu0 %v577
    %v716 = vpop.f32.mrf.mxu0
    %v717 = vadd.f32 0.0, %v716
    %v718 = vpop.f32.mrf.mxu0
    %v719 = vpop.f32.mrf.mxu0
    %v720 = vpop.f32.mrf.mxu0
    %721 = vdwg.mxu0
    %v722 = vadd.f32 %v681, %v717
    %v723 = vtanh.pop %v722
    %v724 = vmul.f32 %v580, %v450
    %v725 = vadd.f32 %v724, %v458
    %726 = vmatprep.subr.bf16.mxu0 0
    %727 = vmatpush1.bf16.msra.mxu0 %v516
    %728 = vmatprep.subr.bf16.mxu0 0
    %729 = vmatpush1.bf16.msra.mxu0 %v515
    %730 = vmatprep.subr.bf16.mxu0 0
    %731 = vmatpush1.bf16.msra.mxu0 %v514
    %732 = vmatprep.subr.bf16.mxu0 0
    %733 = vmatpush1.bf16.msra.mxu0 %v513
    %734 = vmatprep.subr.bf16.mxu0 0
    %735 = vmatpush1.bf16.msra.mxu0 %v512
    %736 = vmatprep.subr.bf16.mxu0 0
    %737 = vmatpush1.bf16.msra.mxu0 %v511
    %738 = vmatprep.subr.bf16.mxu0 0
    %739 = vmatpush1.bf16.msra.mxu0 %v510
    %740 = vmatprep.subr.bf16.mxu0 0
    %741 = vmatpush1.bf16.msra.mxu0 %v509
    %742 = vmatprep.subr.bf16.mxu0 0
    %743 = vmatpush2.bf16.msra.mxu0 0
    %744 = vmatprep.subr.bf16.mxu0 0
    %745 = vmatpush2.bf16.msra.mxu0 0
    %746 = vmatprep.subr.bf16.mxu0 0
    %747 = vmatpush2.bf16.msra.mxu0 0
    %748 = vmatprep.subr.bf16.mxu0 0
    %749 = vmatpush2.bf16.msra.mxu0 0
    %750 = vmatprep.subr.bf16.mxu0 0
    %751 = vmatpush2.bf16.msra.mxu0 0
    %752 = vmatprep.subr.bf16.mxu0 0
    %753 = vmatpush2.bf16.msra.mxu0 0
    %754 = vmatprep.subr.bf16.mxu0 0
    %755 = vmatpush2.bf16.msra.mxu0 0
    %756 = vmatprep.subr.bf16.mxu0 0
    %757 = vmatpush2.bf16.msra.mxu0 0
    %758 = vmatprep.mubr.bf16.mxu0 0
    %759 = vmatmul.mubr.bf16.gmra.mxu0 %v577
    %v760 = vpop.f32.mrf.mxu0
    %v761 = vadd.f32 0.0, %v760
    %v762 = vpop.f32.mrf.mxu0
    %v763 = vpop.f32.mrf.mxu0
    %v764 = vpop.f32.mrf.mxu0
    %765 = vdwg.mxu0
    %v766 = vadd.f32 %v725, %v761
    %v767 = vxor.u32 %v766, 2147483648
    %v768 = vmul.f32 %v767, 1.442695
    %v769 = vpow.pop %v768
    %v770 = vadd.f32 %v769, 1.0
    %v771 = vrcp.pop %v770
    %v772 = vmul.f32 1.0, %v771
    %v773 = vmul.f32 %v679, %v574
    %v774 = vmul.f32 %v630, %v723
    %v775 = vadd.f32 %v773, %v774
    %v776 = vtanh.pop %v775
    %v777 = vmul.f32 %v772, %v776
    %v778 = vpack.c.bf16 %v777, %v777
    %779 = vset.pattern.permute.xlu0 2
    %780 = vperm.xlu0 %779, %v63
    %v781 = vpop.permute.xlu0 %780
    %v783 = vmul.f32 %v781, %v74
    %v784 = vadd.f32 %v783, %v82
    %785 = vmatprep.subr.bf16.mxu0 0
    %786 = vmatpush1.bf16.msra.mxu0 %v140
    %787 = vmatprep.subr.bf16.mxu0 0
    %788 = vmatpush1.bf16.msra.mxu0 %v139
    %789 = vmatprep.subr.bf16.mxu0 0
    %790 = vmatpush1.bf16.msra.mxu0 %v138
    %791 = vmatprep.subr.bf16.mxu0 0
    %792 = vmatpush1.bf16.msra.mxu0 %v137
    %793 = vmatprep.subr.bf16.mxu0 0
    %794 = vmatpush1.bf16.msra.mxu0 %v136
    %795 = vmatprep.subr.bf16.mxu0 0
    %796 = vmatpush1.bf16.msra.mxu0 %v135
    %797 = vmatprep.subr.bf16.mxu0 0
    %798 = vmatpush1.bf16.msra.mxu0 %v134
    %799 = vmatprep.subr.bf16.mxu0 0
    %800 = vmatpush1.bf16.msra.mxu0 %v133
    %801 = vmatprep.subr.bf16.mxu0 0
    %802 = vmatpush2.bf16.msra.mxu0 0
    %803 = vmatprep.subr.bf16.mxu0 0
    %804 = vmatpush2.bf16.msra.mxu0 0
    %805 = vmatprep.subr.bf16.mxu0 0
    %806 = vmatpush2.bf16.msra.mxu0 0
    %807 = vmatprep.subr.bf16.mxu0 0
    %808 = vmatpush2.bf16.msra.mxu0 0
    %809 = vmatprep.subr.bf16.mxu0 0
    %810 = vmatpush2.bf16.msra.mxu0 0
    %811 = vmatprep.subr.bf16.mxu0 0
    %812 = vmatpush2.bf16.msra.mxu0 0
    %813 = vmatprep.subr.bf16.mxu0 0
    %814 = vmatpush2.bf16.msra.mxu0 0
    %815 = vmatprep.subr.bf16.mxu0 0
    %816 = vmatpush2.bf16.msra.mxu0 0
    %817 = vmatprep.mubr.bf16.mxu0 0
    %818 = vmatmul.mubr.bf16.gmra.mxu0 %v778
    %v819 = vpop.f32.mrf.mxu0
    %v820 = vadd.f32 0.0, %v819
    %v821 = vpop.f32.mrf.mxu0
    %v822 = vpop.f32.mrf.mxu0
    %v823 = vpop.f32.mrf.mxu0
    %824 = vdwg.mxu0
    %v825 = vadd.f32 %v784, %v820
    %v826 = vxor.u32 %v825, 2147483648
    %v827 = vmul.f32 %v826, 1.442695
    %v828 = vpow.pop %v827
    %v829 = vadd.f32 %v828, 1.0
    %v830 = vrcp.pop %v829
    %v831 = vmul.f32 1.0, %v830
    %v832 = vmul.f32 %v781, %v201
    %v833 = vadd.f32 %v832, %v209
    %834 = vmatprep.subr.bf16.mxu0 0
    %835 = vmatpush1.bf16.msra.mxu0 %v267
    %836 = vmatprep.subr.bf16.mxu0 0
    %837 = vmatpush1.bf16.msra.mxu0 %v266
    %838 = vmatprep.subr.bf16.mxu0 0
    %839 = vmatpush1.bf16.msra.mxu0 %v265
    %840 = vmatprep.subr.bf16.mxu0 0
    %841 = vmatpush1.bf16.msra.mxu0 %v264
    %842 = vmatprep.subr.bf16.mxu0 0
    %843 = vmatpush1.bf16.msra.mxu0 %v263
    %844 = vmatprep.subr.bf16.mxu0 0
    %845 = vmatpush1.bf16.msra.mxu0 %v262
    %846 = vmatprep.subr.bf16.mxu0 0
    %847 = vmatpush1.bf16.msra.mxu0 %v261
    %848 = vmatprep.subr.bf16.mxu0 0
    %849 = vmatpush1.bf16.msra.mxu0 %v260
    %850 = vmatprep.subr.bf16.mxu0 0
    %851 = vmatpush2.bf16.msra.mxu0 0
    %852 = vmatprep.subr.bf16.mxu0 0
    %853 = vmatpush2.bf16.msra.mxu0 0
    %854 = vmatprep.subr.bf16.mxu0 0
    %855 = vmatpush2.bf16.msra.mxu0 0
    %856 = vmatprep.subr.bf16.mxu0 0
    %857 = vmatpush2.bf16.msra.mxu0 0
    %858 = vmatprep.subr.bf16.mxu0 0
    %859 = vmatpush2.bf16.msra.mxu0 0
    %860 = vmatprep.subr.bf16.mxu0 0
    %861 = vmatpush2.bf16.msra.mxu0 0
    %862 = vmatprep.subr.bf16.mxu0 0
    %863 = vmatpush2.bf16.msra.mxu0 0
    %864 = vmatprep.subr.bf16.mxu0 0
    %865 = vmatpush2.bf16.msra.mxu0 0
    %866 = vmatprep.mubr.bf16.mxu0 0
    %867 = vmatmul.mubr.bf16.gmra.mxu0 %v778
    %v868 = vpop.f32.mrf.mxu0
    %v869 = vadd.f32 0.0, %v868
    %v870 = vpop.f32.mrf.mxu0
    %v871 = vpop.f32.mrf.mxu0
    %v872 = vpop.f32.mrf.mxu0
    %873 = vdwg.mxu0
    %v874 = vadd.f32 %v833, %v869
    %v875 = vxor.u32 %v874, 2147483648
    %v876 = vmul.f32 %v875, 1.442695
    %v877 = vpow.pop %v876
    %v878 = vadd.f32 %v877, 1.0
    %v879 = vrcp.pop %v878
    %v880 = vmul.f32 1.0, %v879
    %v881 = vmul.f32 %v781, %v328
    %v882 = vadd.f32 %v881, %v336
    %883 = vmatprep.subr.bf16.mxu0 0
    %884 = vmatpush1.bf16.msra.mxu0 %v394
    %885 = vmatprep.subr.bf16.mxu0 0
    %886 = vmatpush1.bf16.msra.mxu0 %v393
    %887 = vmatprep.subr.bf16.mxu0 0
    %888 = vmatpush1.bf16.msra.mxu0 %v392
    %889 = vmatprep.subr.bf16.mxu0 0
    %890 = vmatpush1.bf16.msra.mxu0 %v391
    %891 = vmatprep.subr.bf16.mxu0 0
    %892 = vmatpush1.bf16.msra.mxu0 %v390
    %893 = vmatprep.subr.bf16.mxu0 0
    %894 = vmatpush1.bf16.msra.mxu0 %v389
    %895 = vmatprep.subr.bf16.mxu0 0
    %896 = vmatpush1.bf16.msra.mxu0 %v388
    %897 = vmatprep.subr.bf16.mxu0 0
    %898 = vmatpush1.bf16.msra.mxu0 %v387
    %899 = vmatprep.subr.bf16.mxu0 0
    %900 = vmatpush2.bf16.msra.mxu0 0
    %901 = vmatprep.subr.bf16.mxu0 0
    %902 = vmatpush2.bf16.msra.mxu0 0
    %903 = vmatprep.subr.bf16.mxu0 0
    %904 = vmatpush2.bf16.msra.mxu0 0
    %905 = vmatprep.subr.bf16.mxu0 0
    %906 = vmatpush2.bf16.msra.mxu0 0
    %907 = vmatprep.subr.bf16.mxu0 0
    %908 = vmatpush2.bf16.msra.mxu0 0
    %909 = vmatprep.subr.bf16.mxu0 0
    %910 = vmatpush2.bf16.msra.mxu0 0
    %911 = vmatprep.subr.bf16.mxu0 0
    %912 = vmatpush2.bf16.msra.mxu0 0
    %913 = vmatprep.subr.bf16.mxu0 0
    %914 = vmatpush2.bf16.msra.mxu0 0
    %915 = vmatprep.mubr.bf16.mxu0 0
    %916 = vmatmul.mubr.bf16.gmra.mxu0 %v778
    %v917 = vpop.f32.mrf.mxu0
    %v918 = vadd.f32 0.0, %v917
    %v919 = vpop.f32.mrf.mxu0
    %v920 = vpop.f32.mrf.mxu0
    %v921 = vpop.f32.mrf.mxu0
    %922 = vdwg.mxu0
    %v923 = vadd.f32 %v882, %v918
    %v924 = vtanh.pop %v923
    %v925 = vmul.f32 %v781, %v450
    %v926 = vadd.f32 %v925, %v458
    %927 = vmatprep.subr.bf16.mxu0 0
    %928 = vmatpush1.bf16.msra.mxu0 %v516
    %929 = vmatprep.subr.bf16.mxu0 0
    %930 = vmatpush1.bf16.msra.mxu0 %v515
    %931 = vmatprep.subr.bf16.mxu0 0
    %932 = vmatpush1.bf16.msra.mxu0 %v514
    %933 = vmatprep.subr.bf16.mxu0 0
    %934 = vmatpush1.bf16.msra.mxu0 %v513
    %935 = vmatprep.subr.bf16.mxu0 0
    %936 = vmatpush1.bf16.msra.mxu0 %v512
    %937 = vmatprep.subr.bf16.mxu0 0
    %938 = vmatpush1.bf16.msra.mxu0 %v511
    %939 = vmatprep.subr.bf16.mxu0 0
    %940 = vmatpush1.bf16.msra.mxu0 %v510
    %941 = vmatprep.subr.bf16.mxu0 0
    %942 = vmatpush1.bf16.msra.mxu0 %v509
    %943 = vmatprep.subr.bf16.mxu0 0
    %944 = vmatpush2.bf16.msra.mxu0 0
    %945 = vmatprep.subr.bf16.mxu0 0
    %946 = vmatpush2.bf16.msra.mxu0 0
    %947 = vmatprep.subr.bf16.mxu0 0
    %948 = vmatpush2.bf16.msra.mxu0 0
    %949 = vmatprep.subr.bf16.mxu0 0
    %950 = vmatpush2.bf16.msra.mxu0 0
    %951 = vmatprep.subr.bf16.mxu0 0
    %952 = vmatpush2.bf16.msra.mxu0 0
    %953 = vmatprep.subr.bf16.mxu0 0
    %954 = vmatpush2.bf16.msra.mxu0 0
    %955 = vmatprep.subr.bf16.mxu0 0
    %956 = vmatpush2.bf16.msra.mxu0 0
    %957 = vmatprep.subr.bf16.mxu0 0
    %958 = vmatpush2.bf16.msra.mxu0 0
    %959 = vmatprep.mubr.bf16.mxu0 0
    %960 = vmatmul.mubr.bf16.gmra.mxu0 %v778
    %v961 = vpop.f32.mrf.mxu0
    %v962 = vadd.f32 0.0, %v961
    %v963 = vpop.f32.mrf.mxu0
    %v964 = vpop.f32.mrf.mxu0
    %v965 = vpop.f32.mrf.mxu0
    %966 = vdwg.mxu0
    %v967 = vadd.f32 %v926, %v962
    %v968 = vxor.u32 %v967, 2147483648
    %v969 = vmul.f32 %v968, 1.442695
    %v970 = vpow.pop %v969
    %v971 = vadd.f32 %v970, 1.0
    %v972 = vrcp.pop %v971
    %v973 = vmul.f32 1.0, %v972
    %v974 = vmul.f32 %v880, %v775
    %v975 = vmul.f32 %v831, %v924
    %v976 = vadd.f32 %v974, %v975
    %v977 = vtanh.pop %v976
    %v978 = vmul.f32 %v973, %v977
    %v979 = vpack.c.bf16 %v978, %v978
    %980 = vset.pattern.permute.xlu0 3
    %981 = vperm.xlu0 %980, %v63
    %v982 = vpop.permute.xlu0 %981
    %v984 = vmul.f32 %v982, %v74
    %v985 = vadd.f32 %v984, %v82
    %986 = vmatprep.subr.bf16.mxu0 0
    %987 = vmatpush1.bf16.msra.mxu0 %v140
    %988 = vmatprep.subr.bf16.mxu0 0
    %989 = vmatpush1.bf16.msra.mxu0 %v139
    %990 = vmatprep.subr.bf16.mxu0 0
    %991 = vmatpush1.bf16.msra.mxu0 %v138
    %992 = vmatprep.subr.bf16.mxu0 0
    %993 = vmatpush1.bf16.msra.mxu0 %v137
    %994 = vmatprep.subr.bf16.mxu0 0
    %995 = vmatpush1.bf16.msra.mxu0 %v136
    %996 = vmatprep.subr.bf16.mxu0 0
    %997 = vmatpush1.bf16.msra.mxu0 %v135
    %998 = vmatprep.subr.bf16.mxu0 0
    %999 = vmatpush1.bf16.msra.mxu0 %v134
    %1000 = vmatprep.subr.bf16.mxu0 0
    %1001 = vmatpush1.bf16.msra.mxu0 %v133
    %1002 = vmatprep.subr.bf16.mxu0 0
    %1003 = vmatpush2.bf16.msra.mxu0 0
    %1004 = vmatprep.subr.bf16.mxu0 0
    %1005 = vmatpush2.bf16.msra.mxu0 0
    %1006 = vmatprep.subr.bf16.mxu0 0
    %1007 = vmatpush2.bf16.msra.mxu0 0
    %1008 = vmatprep.subr.bf16.mxu0 0
    %1009 = vmatpush2.bf16.msra.mxu0 0
    %1010 = vmatprep.subr.bf16.mxu0 0
    %1011 = vmatpush2.bf16.msra.mxu0 0
    %1012 = vmatprep.subr.bf16.mxu0 0
    %1013 = vmatpush2.bf16.msra.mxu0 0
    %1014 = vmatprep.subr.bf16.mxu0 0
    %1015 = vmatpush2.bf16.msra.mxu0 0
    %1016 = vmatprep.subr.bf16.mxu0 0
    %1017 = vmatpush2.bf16.msra.mxu0 0
    %1018 = vmatprep.mubr.bf16.mxu0 0
    %1019 = vmatmul.mubr.bf16.gmra.mxu0 %v979
    %v1020 = vpop.f32.mrf.mxu0
    %v1021 = vadd.f32 0.0, %v1020
    %v1022 = vpop.f32.mrf.mxu0
    %v1023 = vpop.f32.mrf.mxu0
    %v1024 = vpop.f32.mrf.mxu0
    %1025 = vdwg.mxu0
    %v1026 = vadd.f32 %v985, %v1021
    %v1027 = vxor.u32 %v1026, 2147483648
    %v1028 = vmul.f32 %v1027, 1.442695
    %v1029 = vpow.pop %v1028
    %v1030 = vadd.f32 %v1029, 1.0
    %v1031 = vrcp.pop %v1030
    %v1032 = vmul.f32 1.0, %v1031
    %v1033 = vmul.f32 %v982, %v201
    %v1034 = vadd.f32 %v1033, %v209
    %1035 = vmatprep.subr.bf16.mxu0 0
    %1036 = vmatpush1.bf16.msra.mxu0 %v267
    %1037 = vmatprep.subr.bf16.mxu0 0
    %1038 = vmatpush1.bf16.msra.mxu0 %v266
    %1039 = vmatprep.subr.bf16.mxu0 0
    %1040 = vmatpush1.bf16.msra.mxu0 %v265
    %1041 = vmatprep.subr.bf16.mxu0 0
    %1042 = vmatpush1.bf16.msra.mxu0 %v264
    %1043 = vmatprep.subr.bf16.mxu0 0
    %1044 = vmatpush1.bf16.msra.mxu0 %v263
    %1045 = vmatprep.subr.bf16.mxu0 0
    %1046 = vmatpush1.bf16.msra.mxu0 %v262
    %1047 = vmatprep.subr.bf16.mxu0 0
    %1048 = vmatpush1.bf16.msra.mxu0 %v261
    %1049 = vmatprep.subr.bf16.mxu0 0
    %1050 = vmatpush1.bf16.msra.mxu0 %v260
    %1051 = vmatprep.subr.bf16.mxu0 0
    %1052 = vmatpush2.bf16.msra.mxu0 0
    %1053 = vmatprep.subr.bf16.mxu0 0
    %1054 = vmatpush2.bf16.msra.mxu0 0
    %1055 = vmatprep.subr.bf16.mxu0 0
    %1056 = vmatpush2.bf16.msra.mxu0 0
    %1057 = vmatprep.subr.bf16.mxu0 0
    %1058 = vmatpush2.bf16.msra.mxu0 0
    %1059 = vmatprep.subr.bf16.mxu0 0
    %1060 = vmatpush2.bf16.msra.mxu0 0
    %1061 = vmatprep.subr.bf16.mxu0 0
    %1062 = vmatpush2.bf16.msra.mxu0 0
    %1063 = vmatprep.subr.bf16.mxu0 0
    %1064 = vmatpush2.bf16.msra.mxu0 0
    %1065 = vmatprep.subr.bf16.mxu0 0
    %1066 = vmatpush2.bf16.msra.mxu0 0
    %1067 = vmatprep.mubr.bf16.mxu0 0
    %1068 = vmatmul.mubr.bf16.gmra.mxu0 %v979
    %v1069 = vpop.f32.mrf.mxu0
    %v1070 = vadd.f32 0.0, %v1069
    %v1071 = vpop.f32.mrf.mxu0
    %v1072 = vpop.f32.mrf.mxu0
    %v1073 = vpop.f32.mrf.mxu0
    %1074 = vdwg.mxu0
    %v1075 = vadd.f32 %v1034, %v1070
    %v1076 = vxor.u32 %v1075, 2147483648
    %v1077 = vmul.f32 %v1076, 1.442695
    %v1078 = vpow.pop %v1077
    %v1079 = vadd.f32 %v1078, 1.0
    %v1080 = vrcp.pop %v1079
    %v1081 = vmul.f32 1.0, %v1080
    %v1082 = vmul.f32 %v982, %v328
    %v1083 = vadd.f32 %v1082, %v336
    %1084 = vmatprep.subr.bf16.mxu0 0
    %1085 = vmatpush1.bf16.msra.mxu0 %v394
    %1086 = vmatprep.subr.bf16.mxu0 0
    %1087 = vmatpush1.bf16.msra.mxu0 %v393
    %1088 = vmatprep.subr.bf16.mxu0 0
    %1089 = vmatpush1.bf16.msra.mxu0 %v392
    %1090 = vmatprep.subr.bf16.mxu0 0
    %1091 = vmatpush1.bf16.msra.mxu0 %v391
    %1092 = vmatprep.subr.bf16.mxu0 0
    %1093 = vmatpush1.bf16.msra.mxu0 %v390
    %1094 = vmatprep.subr.bf16.mxu0 0
    %1095 = vmatpush1.bf16.msra.mxu0 %v389
    %1096 = vmatprep.subr.bf16.mxu0 0
    %1097 = vmatpush1.bf16.msra.mxu0 %v388
    %1098 = vmatprep.subr.bf16.mxu0 0
    %1099 = vmatpush1.bf16.msra.mxu0 %v387
    %1100 = vmatprep.subr.bf16.mxu0 0
    %1101 = vmatpush2.bf16.msra.mxu0 0
    %1102 = vmatprep.subr.bf16.mxu0 0
    %1103 = vmatpush2.bf16.msra.mxu0 0
    %1104 = vmatprep.subr.bf16.mxu0 0
    %1105 = vmatpush2.bf16.msra.mxu0 0
    %1106 = vmatprep.subr.bf16.mxu0 0
    %1107 = vmatpush2.bf16.msra.mxu0 0
    %1108 = vmatprep.subr.bf16.mxu0 0
    %1109 = vmatpush2.bf16.msra.mxu0 0
    %1110 = vmatprep.subr.bf16.mxu0 0
    %1111 = vmatpush2.bf16.msra.mxu0 0
    %1112 = vmatprep.subr.bf16.mxu0 0
    %1113 = vmatpush2.bf16.msra.mxu0 0
    %1114 = vmatprep.subr.bf16.mxu0 0
    %1115 = vmatpush2.bf16.msra.mxu0 0
    %1116 = vmatprep.mubr.bf16.mxu0 0
    %1117 = vmatmul.mubr.bf16.gmra.mxu0 %v979
    %v1118 = vpop.f32.mrf.mxu0
    %v1119 = vadd.f32 0.0, %v1118
    %v1120 = vpop.f32.mrf.mxu0
    %v1121 = vpop.f32.mrf.mxu0
    %v1122 = vpop.f32.mrf.mxu0
    %1123 = vdwg.mxu0
    %v1124 = vadd.f32 %v1083, %v1119
    %v1125 = vtanh.pop %v1124
    %v1126 = vmul.f32 %v982, %v450
    %v1127 = vadd.f32 %v1126, %v458
    %1128 = vmatprep.subr.bf16.mxu0 0
    %1129 = vmatpush1.bf16.msra.mxu0 %v516
    %1130 = vmatprep.subr.bf16.mxu0 0
    %1131 = vmatpush1.bf16.msra.mxu0 %v515
    %1132 = vmatprep.subr.bf16.mxu0 0
    %1133 = vmatpush1.bf16.msra.mxu0 %v514
    %1134 = vmatprep.subr.bf16.mxu0 0
    %1135 = vmatpush1.bf16.msra.mxu0 %v513
    %1136 = vmatprep.subr.bf16.mxu0 0
    %1137 = vmatpush1.bf16.msra.mxu0 %v512
    %1138 = vmatprep.subr.bf16.mxu0 0
    %1139 = vmatpush1.bf16.msra.mxu0 %v511
    %1140 = vmatprep.subr.bf16.mxu0 0
    %1141 = vmatpush1.bf16.msra.mxu0 %v510
    %1142 = vmatprep.subr.bf16.mxu0 0
    %1143 = vmatpush1.bf16.msra.mxu0 %v509
    %1144 = vmatprep.subr.bf16.mxu0 0
    %1145 = vmatpush2.bf16.msra.mxu0 0
    %1146 = vmatprep.subr.bf16.mxu0 0
    %1147 = vmatpush2.bf16.msra.mxu0 0
    %1148 = vmatprep.subr.bf16.mxu0 0
    %1149 = vmatpush2.bf16.msra.mxu0 0
    %1150 = vmatprep.subr.bf16.mxu0 0
    %1151 = vmatpush2.bf16.msra.mxu0 0
    %1152 = vmatprep.subr.bf16.mxu0 0
    %1153 = vmatpush2.bf16.msra.mxu0 0
    %1154 = vmatprep.subr.bf16.mxu0 0
    %1155 = vmatpush2.bf16.msra.mxu0 0
    %1156 = vmatprep.subr.bf16.mxu0 0
    %1157 = vmatpush2.bf16.msra.mxu0 0
    %1158 = vmatprep.subr.bf16.mxu0 0
    %1159 = vmatpush2.bf16.msra.mxu0 0
    %1160 = vmatprep.mubr.bf16.mxu0 0
    %1161 = vmatmul.mubr.bf16.gmra.mxu0 %v979
    %v1162 = vpop.f32.mrf.mxu0
    %v1163 = vadd.f32 0.0, %v1162
    %v1164 = vpop.f32.mrf.mxu0
    %v1165 = vpop.f32.mrf.mxu0
    %v1166 = vpop.f32.mrf.mxu0
    %1167 = vdwg.mxu0
    %v1168 = vadd.f32 %v1127, %v1163
    %v1169 = vxor.u32 %v1168, 2147483648
    %v1170 = vmul.f32 %v1169, 1.442695
    %v1171 = vpow.pop %v1170
    %v1172 = vadd.f32 %v1171, 1.0
    %v1173 = vrcp.pop %v1172
    %v1174 = vmul.f32 1.0, %v1173
    %v1175 = vmul.f32 %v1081, %v976
    %v1176 = vmul.f32 %v1032, %v1125
    %v1177 = vadd.f32 %v1175, %v1176
    %v1178 = vtanh.pop %v1177
    %v1179 = vmul.f32 %v1174, %v1178
    %v1180 = vpack.c.bf16 %v1179, %v1179
    %1181 = vset.pattern.permute.xlu0 4
    %1182 = vperm.xlu0 %1181, %v63
    %v1183 = vpop.permute.xlu0 %1182
    %v1185 = vmul.f32 %v1183, %v74
    %v1186 = vadd.f32 %v1185, %v82
    %1187 = vmatprep.subr.bf16.mxu0 0
    %1188 = vmatpush1.bf16.msra.mxu0 %v140
    %1189 = vmatprep.subr.bf16.mxu0 0
    %1190 = vmatpush1.bf16.msra.mxu0 %v139
    %1191 = vmatprep.subr.bf16.mxu0 0
    %1192 = vmatpush1.bf16.msra.mxu0 %v138
    %1193 = vmatprep.subr.bf16.mxu0 0
    %1194 = vmatpush1.bf16.msra.mxu0 %v137
    %1195 = vmatprep.subr.bf16.mxu0 0
    %1196 = vmatpush1.bf16.msra.mxu0 %v136
    %1197 = vmatprep.subr.bf16.mxu0 0
    %1198 = vmatpush1.bf16.msra.mxu0 %v135
    %1199 = vmatprep.subr.bf16.mxu0 0
    %1200 = vmatpush1.bf16.msra.mxu0 %v134
    %1201 = vmatprep.subr.bf16.mxu0 0
    %1202 = vmatpush1.bf16.msra.mxu0 %v133
    %1203 = vmatprep.subr.bf16.mxu0 0
    %1204 = vmatpush2.bf16.msra.mxu0 0
    %1205 = vmatprep.subr.bf16.mxu0 0
    %1206 = vmatpush2.bf16.msra.mxu0 0
    %1207 = vmatprep.subr.bf16.mxu0 0
    %1208 = vmatpush2.bf16.msra.mxu0 0
    %1209 = vmatprep.subr.bf16.mxu0 0
    %1210 = vmatpush2.bf16.msra.mxu0 0
    %1211 = vmatprep.subr.bf16.mxu0 0
    %1212 = vmatpush2.bf16.msra.mxu0 0
    %1213 = vmatprep.subr.bf16.mxu0 0
    %1214 = vmatpush2.bf16.msra.mxu0 0
    %1215 = vmatprep.subr.bf16.mxu0 0
    %1216 = vmatpush2.bf16.msra.mxu0 0
    %1217 = vmatprep.subr.bf16.mxu0 0
    %1218 = vmatpush2.bf16.msra.mxu0 0
    %1219 = vmatprep.mubr.bf16.mxu0 0
    %1220 = vmatmul.mubr.bf16.gmra.mxu0 %v1180
    %v1221 = vpop.f32.mrf.mxu0
    %v1222 = vadd.f32 0.0, %v1221
    %v1223 = vpop.f32.mrf.mxu0
    %v1224 = vpop.f32.mrf.mxu0
    %v1225 = vpop.f32.mrf.mxu0
    %1226 = vdwg.mxu0
    %v1227 = vadd.f32 %v1186, %v1222
    %v1228 = vxor.u32 %v1227, 2147483648
    %v1229 = vmul.f32 %v1228, 1.442695
    %v1230 = vpow.pop %v1229
    %v1231 = vadd.f32 %v1230, 1.0
    %v1232 = vrcp.pop %v1231
    %v1233 = vmul.f32 1.0, %v1232
    %v1234 = vmul.f32 %v1183, %v201
    %v1235 = vadd.f32 %v1234, %v209
    %1236 = vmatprep.subr.bf16.mxu0 0
    %1237 = vmatpush1.bf16.msra.mxu0 %v267
    %1238 = vmatprep.subr.bf16.mxu0 0
    %1239 = vmatpush1.bf16.msra.mxu0 %v266
    %1240 = vmatprep.subr.bf16.mxu0 0
    %1241 = vmatpush1.bf16.msra.mxu0 %v265
    %1242 = vmatprep.subr.bf16.mxu0 0
    %1243 = vmatpush1.bf16.msra.mxu0 %v264
    %1244 = vmatprep.subr.bf16.mxu0 0
    %1245 = vmatpush1.bf16.msra.mxu0 %v263
    %1246 = vmatprep.subr.bf16.mxu0 0
    %1247 = vmatpush1.bf16.msra.mxu0 %v262
    %1248 = vmatprep.subr.bf16.mxu0 0
    %1249 = vmatpush1.bf16.msra.mxu0 %v261
    %1250 = vmatprep.subr.bf16.mxu0 0
    %1251 = vmatpush1.bf16.msra.mxu0 %v260
    %1252 = vmatprep.subr.bf16.mxu0 0
    %1253 = vmatpush2.bf16.msra.mxu0 0
    %1254 = vmatprep.subr.bf16.mxu0 0
    %1255 = vmatpush2.bf16.msra.mxu0 0
    %1256 = vmatprep.subr.bf16.mxu0 0
    %1257 = vmatpush2.bf16.msra.mxu0 0
    %1258 = vmatprep.subr.bf16.mxu0 0
    %1259 = vmatpush2.bf16.msra.mxu0 0
    %1260 = vmatprep.subr.bf16.mxu0 0
    %1261 = vmatpush2.bf16.msra.mxu0 0
    %1262 = vmatprep.subr.bf16.mxu0 0
    %1263 = vmatpush2.bf16.msra.mxu0 0
    %1264 = vmatprep.subr.bf16.mxu0 0
    %1265 = vmatpush2.bf16.msra.mxu0 0
    %1266 = vmatprep.subr.bf16.mxu0 0
    %1267 = vmatpush2.bf16.msra.mxu0 0
    %1268 = vmatprep.mubr.bf16.mxu0 0
    %1269 = vmatmul.mubr.bf16.gmra.mxu0 %v1180
    %v1270 = vpop.f32.mrf.mxu0
    %v1271 = vadd.f32 0.0, %v1270
    %v1272 = vpop.f32.mrf.mxu0
    %v1273 = vpop.f32.mrf.mxu0
    %v1274 = vpop.f32.mrf.mxu0
    %1275 = vdwg.mxu0
    %v1276 = vadd.f32 %v1235, %v1271
    %v1277 = vxor.u32 %v1276, 2147483648
    %v1278 = vmul.f32 %v1277, 1.442695
    %v1279 = vpow.pop %v1278
    %v1280 = vadd.f32 %v1279, 1.0
    %v1281 = vrcp.pop %v1280
    %v1282 = vmul.f32 1.0, %v1281
    %v1283 = vmul.f32 %v1183, %v328
    %v1284 = vadd.f32 %v1283, %v336
    %1285 = vmatprep.subr.bf16.mxu0 0
    %1286 = vmatpush1.bf16.msra.mxu0 %v394
    %1287 = vmatprep.subr.bf16.mxu0 0
    %1288 = vmatpush1.bf16.msra.mxu0 %v393
    %1289 = vmatprep.subr.bf16.mxu0 0
    %1290 = vmatpush1.bf16.msra.mxu0 %v392
    %1291 = vmatprep.subr.bf16.mxu0 0
    %1292 = vmatpush1.bf16.msra.mxu0 %v391
    %1293 = vmatprep.subr.bf16.mxu0 0
    %1294 = vmatpush1.bf16.msra.mxu0 %v390
    %1295 = vmatprep.subr.bf16.mxu0 0
    %1296 = vmatpush1.bf16.msra.mxu0 %v389
    %1297 = vmatprep.subr.bf16.mxu0 0
    %1298 = vmatpush1.bf16.msra.mxu0 %v388
    %1299 = vmatprep.subr.bf16.mxu0 0
    %1300 = vmatpush1.bf16.msra.mxu0 %v387
    %1301 = vmatprep.subr.bf16.mxu0 0
    %1302 = vmatpush2.bf16.msra.mxu0 0
    %1303 = vmatprep.subr.bf16.mxu0 0
    %1304 = vmatpush2.bf16.msra.mxu0 0
    %1305 = vmatprep.subr.bf16.mxu0 0
    %1306 = vmatpush2.bf16.msra.mxu0 0
    %1307 = vmatprep.subr.bf16.mxu0 0
    %1308 = vmatpush2.bf16.msra.mxu0 0
    %1309 = vmatprep.subr.bf16.mxu0 0
    %1310 = vmatpush2.bf16.msra.mxu0 0
    %1311 = vmatprep.subr.bf16.mxu0 0
    %1312 = vmatpush2.bf16.msra.mxu0 0
    %1313 = vmatprep.subr.bf16.mxu0 0
    %1314 = vmatpush2.bf16.msra.mxu0 0
    %1315 = vmatprep.subr.bf16.mxu0 0
    %1316 = vmatpush2.bf16.msra.mxu0 0
    %1317 = vmatprep.mubr.bf16.mxu0 0
    %1318 = vmatmul.mubr.bf16.gmra.mxu0 %v1180
    %v1319 = vpop.f32.mrf.mxu0
    %v1320 = vadd.f32 0.0, %v1319
    %v1321 = vpop.f32.mrf.mxu0
    %v1322 = vpop.f32.mrf.mxu0
    %v1323 = vpop.f32.mrf.mxu0
    %1324 = vdwg.mxu0
    %v1325 = vadd.f32 %v1284, %v1320
    %v1326 = vtanh.pop %v1325
    %v1327 = vmul.f32 %v1183, %v450
    %v1328 = vadd.f32 %v1327, %v458
    %1329 = vmatprep.subr.bf16.mxu0 0
    %1330 = vmatpush1.bf16.msra.mxu0 %v516
    %1331 = vmatprep.subr.bf16.mxu0 0
    %1332 = vmatpush1.bf16.msra.mxu0 %v515
    %1333 = vmatprep.subr.bf16.mxu0 0
    %1334 = vmatpush1.bf16.msra.mxu0 %v514
    %1335 = vmatprep.subr.bf16.mxu0 0
    %1336 = vmatpush1.bf16.msra.mxu0 %v513
    %1337 = vmatprep.subr.bf16.mxu0 0
    %1338 = vmatpush1.bf16.msra.mxu0 %v512
    %1339 = vmatprep.subr.bf16.mxu0 0
    %1340 = vmatpush1.bf16.msra.mxu0 %v511
    %1341 = vmatprep.subr.bf16.mxu0 0
    %1342 = vmatpush1.bf16.msra.mxu0 %v510
    %1343 = vmatprep.subr.bf16.mxu0 0
    %1344 = vmatpush1.bf16.msra.mxu0 %v509
    %1345 = vmatprep.subr.bf16.mxu0 0
    %1346 = vmatpush2.bf16.msra.mxu0 0
    %1347 = vmatprep.subr.bf16.mxu0 0
    %1348 = vmatpush2.bf16.msra.mxu0 0
    %1349 = vmatprep.subr.bf16.mxu0 0
    %1350 = vmatpush2.bf16.msra.mxu0 0
    %1351 = vmatprep.subr.bf16.mxu0 0
    %1352 = vmatpush2.bf16.msra.mxu0 0
    %1353 = vmatprep.subr.bf16.mxu0 0
    %1354 = vmatpush2.bf16.msra.mxu0 0
    %1355 = vmatprep.subr.bf16.mxu0 0
    %1356 = vmatpush2.bf16.msra.mxu0 0
    %1357 = vmatprep.subr.bf16.mxu0 0
    %1358 = vmatpush2.bf16.msra.mxu0 0
    %1359 = vmatprep.subr.bf16.mxu0 0
    %1360 = vmatpush2.bf16.msra.mxu0 0
    %1361 = vmatprep.mubr.bf16.mxu0 0
    %1362 = vmatmul.mubr.bf16.gmra.mxu0 %v1180
    %v1363 = vpop.f32.mrf.mxu0
    %v1364 = vadd.f32 0.0, %v1363
    %v1365 = vpop.f32.mrf.mxu0
    %v1366 = vpop.f32.mrf.mxu0
    %v1367 = vpop.f32.mrf.mxu0
    %1368 = vdwg.mxu0
    %v1369 = vadd.f32 %v1328, %v1364
    %v1370 = vxor.u32 %v1369, 2147483648
    %v1371 = vmul.f32 %v1370, 1.442695
    %v1372 = vpow.pop %v1371
    %v1373 = vadd.f32 %v1372, 1.0
    %v1374 = vrcp.pop %v1373
    %v1375 = vmul.f32 1.0, %v1374
    %v1376 = vmul.f32 %v1282, %v1177
    %v1377 = vmul.f32 %v1233, %v1326
    %v1378 = vadd.f32 %v1376, %v1377
    %v1379 = vtanh.pop %v1378
    %v1380 = vmul.f32 %v1375, %v1379
    %v1381 = vpack.c.bf16 %v1380, %v1380
    %1382 = vset.pattern.permute.xlu0 5
    %1383 = vperm.xlu0 %1382, %v63
    %v1384 = vpop.permute.xlu0 %1383
    %v1386 = vmul.f32 %v1384, %v74
    %v1387 = vadd.f32 %v1386, %v82
    %1388 = vmatprep.subr.bf16.mxu0 0
    %1389 = vmatpush1.bf16.msra.mxu0 %v140
    %1390 = vmatprep.subr.bf16.mxu0 0
    %1391 = vmatpush1.bf16.msra.mxu0 %v139
    %1392 = vmatprep.subr.bf16.mxu0 0
    %1393 = vmatpush1.bf16.msra.mxu0 %v138
    %1394 = vmatprep.subr.bf16.mxu0 0
    %1395 = vmatpush1.bf16.msra.mxu0 %v137
    %1396 = vmatprep.subr.bf16.mxu0 0
    %1397 = vmatpush1.bf16.msra.mxu0 %v136
    %1398 = vmatprep.subr.bf16.mxu0 0
    %1399 = vmatpush1.bf16.msra.mxu0 %v135
    %1400 = vmatprep.subr.bf16.mxu0 0
    %1401 = vmatpush1.bf16.msra.mxu0 %v134
    %1402 = vmatprep.subr.bf16.mxu0 0
    %1403 = vmatpush1.bf16.msra.mxu0 %v133
    %1404 = vmatprep.subr.bf16.mxu0 0
    %1405 = vmatpush2.bf16.msra.mxu0 0
    %1406 = vmatprep.subr.bf16.mxu0 0
    %1407 = vmatpush2.bf16.msra.mxu0 0
    %1408 = vmatprep.subr.bf16.mxu0 0
    %1409 = vmatpush2.bf16.msra.mxu0 0
    %1410 = vmatprep.subr.bf16.mxu0 0
    %1411 = vmatpush2.bf16.msra.mxu0 0
    %1412 = vmatprep.subr.bf16.mxu0 0
    %1413 = vmatpush2.bf16.msra.mxu0 0
    %1414 = vmatprep.subr.bf16.mxu0 0
    %1415 = vmatpush2.bf16.msra.mxu0 0
    %1416 = vmatprep.subr.bf16.mxu0 0
    %1417 = vmatpush2.bf16.msra.mxu0 0
    %1418 = vmatprep.subr.bf16.mxu0 0
    %1419 = vmatpush2.bf16.msra.mxu0 0
    %1420 = vmatprep.mubr.bf16.mxu0 0
    %1421 = vmatmul.mubr.bf16.gmra.mxu0 %v1381
    %v1422 = vpop.f32.mrf.mxu0
    %v1423 = vadd.f32 0.0, %v1422
    %v1424 = vpop.f32.mrf.mxu0
    %v1425 = vpop.f32.mrf.mxu0
    %v1426 = vpop.f32.mrf.mxu0
    %1427 = vdwg.mxu0
    %v1428 = vadd.f32 %v1387, %v1423
    %v1429 = vxor.u32 %v1428, 2147483648
    %v1430 = vmul.f32 %v1429, 1.442695
    %v1431 = vpow.pop %v1430
    %v1432 = vadd.f32 %v1431, 1.0
    %v1433 = vrcp.pop %v1432
    %v1434 = vmul.f32 1.0, %v1433
    %v1435 = vmul.f32 %v1384, %v201
    %v1436 = vadd.f32 %v1435, %v209
    %1437 = vmatprep.subr.bf16.mxu0 0
    %1438 = vmatpush1.bf16.msra.mxu0 %v267
    %1439 = vmatprep.subr.bf16.mxu0 0
    %1440 = vmatpush1.bf16.msra.mxu0 %v266
    %1441 = vmatprep.subr.bf16.mxu0 0
    %1442 = vmatpush1.bf16.msra.mxu0 %v265
    %1443 = vmatprep.subr.bf16.mxu0 0
    %1444 = vmatpush1.bf16.msra.mxu0 %v264
    %1445 = vmatprep.subr.bf16.mxu0 0
    %1446 = vmatpush1.bf16.msra.mxu0 %v263
    %1447 = vmatprep.subr.bf16.mxu0 0
    %1448 = vmatpush1.bf16.msra.mxu0 %v262
    %1449 = vmatprep.subr.bf16.mxu0 0
    %1450 = vmatpush1.bf16.msra.mxu0 %v261
    %1451 = vmatprep.subr.bf16.mxu0 0
    %1452 = vmatpush1.bf16.msra.mxu0 %v260
    %1453 = vmatprep.subr.bf16.mxu0 0
    %1454 = vmatpush2.bf16.msra.mxu0 0
    %1455 = vmatprep.subr.bf16.mxu0 0
    %1456 = vmatpush2.bf16.msra.mxu0 0
    %1457 = vmatprep.subr.bf16.mxu0 0
    %1458 = vmatpush2.bf16.msra.mxu0 0
    %1459 = vmatprep.subr.bf16.mxu0 0
    %1460 = vmatpush2.bf16.msra.mxu0 0
    %1461 = vmatprep.subr.bf16.mxu0 0
    %1462 = vmatpush2.bf16.msra.mxu0 0
    %1463 = vmatprep.subr.bf16.mxu0 0
    %1464 = vmatpush2.bf16.msra.mxu0 0
    %1465 = vmatprep.subr.bf16.mxu0 0
    %1466 = vmatpush2.bf16.msra.mxu0 0
    %1467 = vmatprep.subr.bf16.mxu0 0
    %1468 = vmatpush2.bf16.msra.mxu0 0
    %1469 = vmatprep.mubr.bf16.mxu0 0
    %1470 = vmatmul.mubr.bf16.gmra.mxu0 %v1381
    %v1471 = vpop.f32.mrf.mxu0
    %v1472 = vadd.f32 0.0, %v1471
    %v1473 = vpop.f32.mrf.mxu0
    %v1474 = vpop.f32.mrf.mxu0
    %v1475 = vpop.f32.mrf.mxu0
    %1476 = vdwg.mxu0
    %v1477 = vadd.f32 %v1436, %v1472
    %v1478 = vxor.u32 %v1477, 2147483648
    %v1479 = vmul.f32 %v1478, 1.442695
    %v1480 = vpow.pop %v1479
    %v1481 = vadd.f32 %v1480, 1.0
    %v1482 = vrcp.pop %v1481
    %v1483 = vmul.f32 1.0, %v1482
    %v1484 = vmul.f32 %v1384, %v328
    %v1485 = vadd.f32 %v1484, %v336
    %1486 = vmatprep.subr.bf16.mxu0 0
    %1487 = vmatpush1.bf16.msra.mxu0 %v394
    %1488 = vmatprep.subr.bf16.mxu0 0
    %1489 = vmatpush1.bf16.msra.mxu0 %v393
    %1490 = vmatprep.subr.bf16.mxu0 0
    %1491 = vmatpush1.bf16.msra.mxu0 %v392
    %1492 = vmatprep.subr.bf16.mxu0 0
    %1493 = vmatpush1.bf16.msra.mxu0 %v391
    %1494 = vmatprep.subr.bf16.mxu0 0
    %1495 = vmatpush1.bf16.msra.mxu0 %v390
    %1496 = vmatprep.subr.bf16.mxu0 0
    %1497 = vmatpush1.bf16.msra.mxu0 %v389
    %1498 = vmatprep.subr.bf16.mxu0 0
    %1499 = vmatpush1.bf16.msra.mxu0 %v388
    %1500 = vmatprep.subr.bf16.mxu0 0
    %1501 = vmatpush1.bf16.msra.mxu0 %v387
    %1502 = vmatprep.subr.bf16.mxu0 0
    %1503 = vmatpush2.bf16.msra.mxu0 0
    %1504 = vmatprep.subr.bf16.mxu0 0
    %1505 = vmatpush2.bf16.msra.mxu0 0
    %1506 = vmatprep.subr.bf16.mxu0 0
    %1507 = vmatpush2.bf16.msra.mxu0 0
    %1508 = vmatprep.subr.bf16.mxu0 0
    %1509 = vmatpush2.bf16.msra.mxu0 0
    %1510 = vmatprep.subr.bf16.mxu0 0
    %1511 = vmatpush2.bf16.msra.mxu0 0
    %1512 = vmatprep.subr.bf16.mxu0 0
    %1513 = vmatpush2.bf16.msra.mxu0 0
    %1514 = vmatprep.subr.bf16.mxu0 0
    %1515 = vmatpush2.bf16.msra.mxu0 0
    %1516 = vmatprep.subr.bf16.mxu0 0
    %1517 = vmatpush2.bf16.msra.mxu0 0
    %1518 = vmatprep.mubr.bf16.mxu0 0
    %1519 = vmatmul.mubr.bf16.gmra.mxu0 %v1381
    %v1520 = vpop.f32.mrf.mxu0
    %v1521 = vadd.f32 0.0, %v1520
    %v1522 = vpop.f32.mrf.mxu0
    %v1523 = vpop.f32.mrf.mxu0
    %v1524 = vpop.f32.mrf.mxu0
    %1525 = vdwg.mxu0
    %v1526 = vadd.f32 %v1485, %v1521
    %v1527 = vtanh.pop %v1526
    %v1528 = vmul.f32 %v1384, %v450
    %v1529 = vadd.f32 %v1528, %v458
    %1530 = vmatprep.subr.bf16.mxu0 0
    %1531 = vmatpush1.bf16.msra.mxu0 %v516
    %1532 = vmatprep.subr.bf16.mxu0 0
    %1533 = vmatpush1.bf16.msra.mxu0 %v515
    %1534 = vmatprep.subr.bf16.mxu0 0
    %1535 = vmatpush1.bf16.msra.mxu0 %v514
    %1536 = vmatprep.subr.bf16.mxu0 0
    %1537 = vmatpush1.bf16.msra.mxu0 %v513
    %1538 = vmatprep.subr.bf16.mxu0 0
    %1539 = vmatpush1.bf16.msra.mxu0 %v512
    %1540 = vmatprep.subr.bf16.mxu0 0
    %1541 = vmatpush1.bf16.msra.mxu0 %v511
    %1542 = vmatprep.subr.bf16.mxu0 0
    %1543 = vmatpush1.bf16.msra.mxu0 %v510
    %1544 = vmatprep.subr.bf16.mxu0 0
    %1545 = vmatpush1.bf16.msra.mxu0 %v509
    %1546 = vmatprep.subr.bf16.mxu0 0
    %1547 = vmatpush2.bf16.msra.mxu0 0
    %1548 = vmatprep.subr.bf16.mxu0 0
    %1549 = vmatpush2.bf16.msra.mxu0 0
    %1550 = vmatprep.subr.bf16.mxu0 0
    %1551 = vmatpush2.bf16.msra.mxu0 0
    %1552 = vmatprep.subr.bf16.mxu0 0
    %1553 = vmatpush2.bf16.msra.mxu0 0
    %1554 = vmatprep.subr.bf16.mxu0 0
    %1555 = vmatpush2.bf16.msra.mxu0 0
    %1556 = vmatprep.subr.bf16.mxu0 0
    %1557 = vmatpush2.bf16.msra.mxu0 0
    %1558 = vmatprep.subr.bf16.mxu0 0
    %1559 = vmatpush2.bf16.msra.mxu0 0
    %1560 = vmatprep.subr.bf16.mxu0 0
    %1561 = vmatpush2.bf16.msra.mxu0 0
    %1562 = vmatprep.mubr.bf16.mxu0 0
    %1563 = vmatmul.mubr.bf16.gmra.mxu0 %v1381
    %v1564 = vpop.f32.mrf.mxu0
    %v1565 = vadd.f32 0.0, %v1564
    %v1566 = vpop.f32.mrf.mxu0
    %v1567 = vpop.f32.mrf.mxu0
    %v1568 = vpop.f32.mrf.mxu0
    %1569 = vdwg.mxu0
    %v1570 = vadd.f32 %v1529, %v1565
    %v1571 = vxor.u32 %v1570, 2147483648
    %v1572 = vmul.f32 %v1571, 1.442695
    %v1573 = vpow.pop %v1572
    %v1574 = vadd.f32 %v1573, 1.0
    %v1575 = vrcp.pop %v1574
    %v1576 = vmul.f32 1.0, %v1575
    %v1577 = vmul.f32 %v1483, %v1378
    %v1578 = vmul.f32 %v1434, %v1527
    %v1579 = vadd.f32 %v1577, %v1578
    %v1580 = vtanh.pop %v1579
    %v1581 = vmul.f32 %v1576, %v1580
    %v1582 = vpack.c.bf16 %v1581, %v1581
    %1583 = vset.pattern.permute.xlu0 6
    %1584 = vperm.xlu0 %1583, %v63
    %v1585 = vpop.permute.xlu0 %1584
    %v1587 = vmul.f32 %v1585, %v74
    %v1588 = vadd.f32 %v1587, %v82
    %1589 = vmatprep.subr.bf16.mxu0 0
    %1590 = vmatpush1.bf16.msra.mxu0 %v140
    %1591 = vmatprep.subr.bf16.mxu0 0
    %1592 = vmatpush1.bf16.msra.mxu0 %v139
    %1593 = vmatprep.subr.bf16.mxu0 0
    %1594 = vmatpush1.bf16.msra.mxu0 %v138
    %1595 = vmatprep.subr.bf16.mxu0 0
    %1596 = vmatpush1.bf16.msra.mxu0 %v137
    %1597 = vmatprep.subr.bf16.mxu0 0
    %1598 = vmatpush1.bf16.msra.mxu0 %v136
    %1599 = vmatprep.subr.bf16.mxu0 0
    %1600 = vmatpush1.bf16.msra.mxu0 %v135
    %1601 = vmatprep.subr.bf16.mxu0 0
    %1602 = vmatpush1.bf16.msra.mxu0 %v134
    %1603 = vmatprep.subr.bf16.mxu0 0
    %1604 = vmatpush1.bf16.msra.mxu0 %v133
    %1605 = vmatprep.subr.bf16.mxu0 0
    %1606 = vmatpush2.bf16.msra.mxu0 0
    %1607 = vmatprep.subr.bf16.mxu0 0
    %1608 = vmatpush2.bf16.msra.mxu0 0
    %1609 = vmatprep.subr.bf16.mxu0 0
    %1610 = vmatpush2.bf16.msra.mxu0 0
    %1611 = vmatprep.subr.bf16.mxu0 0
    %1612 = vmatpush2.bf16.msra.mxu0 0
    %1613 = vmatprep.subr.bf16.mxu0 0
    %1614 = vmatpush2.bf16.msra.mxu0 0
    %1615 = vmatprep.subr.bf16.mxu0 0
    %1616 = vmatpush2.bf16.msra.mxu0 0
    %1617 = vmatprep.subr.bf16.mxu0 0
    %1618 = vmatpush2.bf16.msra.mxu0 0
    %1619 = vmatprep.subr.bf16.mxu0 0
    %1620 = vmatpush2.bf16.msra.mxu0 0
    %1621 = vmatprep.mubr.bf16.mxu0 0
    %1622 = vmatmul.mubr.bf16.gmra.mxu0 %v1582
    %v1623 = vpop.f32.mrf.mxu0
    %v1624 = vadd.f32 0.0, %v1623
    %v1625 = vpop.f32.mrf.mxu0
    %v1626 = vpop.f32.mrf.mxu0
    %v1627 = vpop.f32.mrf.mxu0
    %1628 = vdwg.mxu0
    %v1629 = vadd.f32 %v1588, %v1624
    %v1630 = vxor.u32 %v1629, 2147483648
    %v1631 = vmul.f32 %v1630, 1.442695
    %v1632 = vpow.pop %v1631
    %v1633 = vadd.f32 %v1632, 1.0
    %v1634 = vrcp.pop %v1633
    %v1635 = vmul.f32 1.0, %v1634
    %v1636 = vmul.f32 %v1585, %v201
    %v1637 = vadd.f32 %v1636, %v209
    %1638 = vmatprep.subr.bf16.mxu0 0
    %1639 = vmatpush1.bf16.msra.mxu0 %v267
    %1640 = vmatprep.subr.bf16.mxu0 0
    %1641 = vmatpush1.bf16.msra.mxu0 %v266
    %1642 = vmatprep.subr.bf16.mxu0 0
    %1643 = vmatpush1.bf16.msra.mxu0 %v265
    %1644 = vmatprep.subr.bf16.mxu0 0
    %1645 = vmatpush1.bf16.msra.mxu0 %v264
    %1646 = vmatprep.subr.bf16.mxu0 0
    %1647 = vmatpush1.bf16.msra.mxu0 %v263
    %1648 = vmatprep.subr.bf16.mxu0 0
    %1649 = vmatpush1.bf16.msra.mxu0 %v262
    %1650 = vmatprep.subr.bf16.mxu0 0
    %1651 = vmatpush1.bf16.msra.mxu0 %v261
    %1652 = vmatprep.subr.bf16.mxu0 0
    %1653 = vmatpush1.bf16.msra.mxu0 %v260
    %1654 = vmatprep.subr.bf16.mxu0 0
    %1655 = vmatpush2.bf16.msra.mxu0 0
    %1656 = vmatprep.subr.bf16.mxu0 0
    %1657 = vmatpush2.bf16.msra.mxu0 0
    %1658 = vmatprep.subr.bf16.mxu0 0
    %1659 = vmatpush2.bf16.msra.mxu0 0
    %1660 = vmatprep.subr.bf16.mxu0 0
    %1661 = vmatpush2.bf16.msra.mxu0 0
    %1662 = vmatprep.subr.bf16.mxu0 0
    %1663 = vmatpush2.bf16.msra.mxu0 0
    %1664 = vmatprep.subr.bf16.mxu0 0
    %1665 = vmatpush2.bf16.msra.mxu0 0
    %1666 = vmatprep.subr.bf16.mxu0 0
    %1667 = vmatpush2.bf16.msra.mxu0 0
    %1668 = vmatprep.subr.bf16.mxu0 0
    %1669 = vmatpush2.bf16.msra.mxu0 0
    %1670 = vmatprep.mubr.bf16.mxu0 0
    %1671 = vmatmul.mubr.bf16.gmra.mxu0 %v1582
    %v1672 = vpop.f32.mrf.mxu0
    %v1673 = vadd.f32 0.0, %v1672
    %v1674 = vpop.f32.mrf.mxu0
    %v1675 = vpop.f32.mrf.mxu0
    %v1676 = vpop.f32.mrf.mxu0
    %1677 = vdwg.mxu0
    %v1678 = vadd.f32 %v1637, %v1673
    %v1679 = vxor.u32 %v1678, 2147483648
    %v1680 = vmul.f32 %v1679, 1.442695
    %v1681 = vpow.pop %v1680
    %v1682 = vadd.f32 %v1681, 1.0
    %v1683 = vrcp.pop %v1682
    %v1684 = vmul.f32 1.0, %v1683
    %v1685 = vmul.f32 %v1585, %v328
    %v1686 = vadd.f32 %v1685, %v336
    %1687 = vmatprep.subr.bf16.mxu0 0
    %1688 = vmatpush1.bf16.msra.mxu0 %v394
    %1689 = vmatprep.subr.bf16.mxu0 0
    %1690 = vmatpush1.bf16.msra.mxu0 %v393
    %1691 = vmatprep.subr.bf16.mxu0 0
    %1692 = vmatpush1.bf16.msra.mxu0 %v392
    %1693 = vmatprep.subr.bf16.mxu0 0
    %1694 = vmatpush1.bf16.msra.mxu0 %v391
    %1695 = vmatprep.subr.bf16.mxu0 0
    %1696 = vmatpush1.bf16.msra.mxu0 %v390
    %1697 = vmatprep.subr.bf16.mxu0 0
    %1698 = vmatpush1.bf16.msra.mxu0 %v389
    %1699 = vmatprep.subr.bf16.mxu0 0
    %1700 = vmatpush1.bf16.msra.mxu0 %v388
    %1701 = vmatprep.subr.bf16.mxu0 0
    %1702 = vmatpush1.bf16.msra.mxu0 %v387
    %1703 = vmatprep.subr.bf16.mxu0 0
    %1704 = vmatpush2.bf16.msra.mxu0 0
    %1705 = vmatprep.subr.bf16.mxu0 0
    %1706 = vmatpush2.bf16.msra.mxu0 0
    %1707 = vmatprep.subr.bf16.mxu0 0
    %1708 = vmatpush2.bf16.msra.mxu0 0
    %1709 = vmatprep.subr.bf16.mxu0 0
    %1710 = vmatpush2.bf16.msra.mxu0 0
    %1711 = vmatprep.subr.bf16.mxu0 0
    %1712 = vmatpush2.bf16.msra.mxu0 0
    %1713 = vmatprep.subr.bf16.mxu0 0
    %1714 = vmatpush2.bf16.msra.mxu0 0
    %1715 = vmatprep.subr.bf16.mxu0 0
    %1716 = vmatpush2.bf16.msra.mxu0 0
    %1717 = vmatprep.subr.bf16.mxu0 0
    %1718 = vmatpush2.bf16.msra.mxu0 0
    %1719 = vmatprep.mubr.bf16.mxu0 0
    %1720 = vmatmul.mubr.bf16.gmra.mxu0 %v1582
    %v1721 = vpop.f32.mrf.mxu0
    %v1722 = vadd.f32 0.0, %v1721
    %v1723 = vpop.f32.mrf.mxu0
    %v1724 = vpop.f32.mrf.mxu0
    %v1725 = vpop.f32.mrf.mxu0
    %1726 = vdwg.mxu0
    %v1727 = vadd.f32 %v1686, %v1722
    %v1728 = vtanh.pop %v1727
    %v1729 = vmul.f32 %v1585, %v450
    %v1730 = vadd.f32 %v1729, %v458
    %1731 = vmatprep.subr.bf16.mxu0 0
    %1732 = vmatpush1.bf16.msra.mxu0 %v516
    %1733 = vmatprep.subr.bf16.mxu0 0
    %1734 = vmatpush1.bf16.msra.mxu0 %v515
    %1735 = vmatprep.subr.bf16.mxu0 0
    %1736 = vmatpush1.bf16.msra.mxu0 %v514
    %1737 = vmatprep.subr.bf16.mxu0 0
    %1738 = vmatpush1.bf16.msra.mxu0 %v513
    %1739 = vmatprep.subr.bf16.mxu0 0
    %1740 = vmatpush1.bf16.msra.mxu0 %v512
    %1741 = vmatprep.subr.bf16.mxu0 0
    %1742 = vmatpush1.bf16.msra.mxu0 %v511
    %1743 = vmatprep.subr.bf16.mxu0 0
    %1744 = vmatpush1.bf16.msra.mxu0 %v510
    %1745 = vmatprep.subr.bf16.mxu0 0
    %1746 = vmatpush1.bf16.msra.mxu0 %v509
    %1747 = vmatprep.subr.bf16.mxu0 0
    %1748 = vmatpush2.bf16.msra.mxu0 0
    %1749 = vmatprep.subr.bf16.mxu0 0
    %1750 = vmatpush2.bf16.msra.mxu0 0
    %1751 = vmatprep.subr.bf16.mxu0 0
    %1752 = vmatpush2.bf16.msra.mxu0 0
    %1753 = vmatprep.subr.bf16.mxu0 0
    %1754 = vmatpush2.bf16.msra.mxu0 0
    %1755 = vmatprep.subr.bf16.mxu0 0
    %1756 = vmatpush2.bf16.msra.mxu0 0
    %1757 = vmatprep.subr.bf16.mxu0 0
    %1758 = vmatpush2.bf16.msra.mxu0 0
    %1759 = vmatprep.subr.bf16.mxu0 0
    %1760 = vmatpush2.bf16.msra.mxu0 0
    %1761 = vmatprep.subr.bf16.mxu0 0
    %1762 = vmatpush2.bf16.msra.mxu0 0
    %1763 = vmatprep.mubr.bf16.mxu0 0
    %1764 = vmatmul.mubr.bf16.gmra.mxu0 %v1582
    %v1765 = vpop.f32.mrf.mxu0
    %v1766 = vadd.f32 0.0, %v1765
    %v1767 = vpop.f32.mrf.mxu0
    %v1768 = vpop.f32.mrf.mxu0
    %v1769 = vpop.f32.mrf.mxu0
    %1770 = vdwg.mxu0
    %v1771 = vadd.f32 %v1730, %v1766
    %v1772 = vxor.u32 %v1771, 2147483648
    %v1773 = vmul.f32 %v1772, 1.442695
    %v1774 = vpow.pop %v1773
    %v1775 = vadd.f32 %v1774, 1.0
    %v1776 = vrcp.pop %v1775
    %v1777 = vmul.f32 1.0, %v1776
    %v1778 = vmul.f32 %v1684, %v1579
    %v1779 = vmul.f32 %v1635, %v1728
    %v1780 = vadd.f32 %v1778, %v1779
    %v1781 = vtanh.pop %v1780
    %v1782 = vmul.f32 %v1777, %v1781
    %v1783 = vpack.c.bf16 %v1782, %v1782
    %1784 = vset.pattern.permute.xlu0 7
    %1785 = vperm.xlu0 %1784, %v63
    %v1786 = vpop.permute.xlu0 %1785
    %v1788 = vmul.f32 %v1786, %v74
    %v1789 = vadd.f32 %v1788, %v82
    %1790 = vmatprep.subr.bf16.mxu0 0
    %1791 = vmatpush1.bf16.msra.mxu0 %v140
    %1792 = vmatprep.subr.bf16.mxu0 0
    %1793 = vmatpush1.bf16.msra.mxu0 %v139
    %1794 = vmatprep.subr.bf16.mxu0 0
    %1795 = vmatpush1.bf16.msra.mxu0 %v138
    %1796 = vmatprep.subr.bf16.mxu0 0
    %1797 = vmatpush1.bf16.msra.mxu0 %v137
    %1798 = vmatprep.subr.bf16.mxu0 0
    %1799 = vmatpush1.bf16.msra.mxu0 %v136
    %1800 = vmatprep.subr.bf16.mxu0 0
    %1801 = vmatpush1.bf16.msra.mxu0 %v135
    %1802 = vmatprep.subr.bf16.mxu0 0
    %1803 = vmatpush1.bf16.msra.mxu0 %v134
    %1804 = vmatprep.subr.bf16.mxu0 0
    %1805 = vmatpush1.bf16.msra.mxu0 %v133
    %1806 = vmatprep.subr.bf16.mxu0 0
    %1807 = vmatpush2.bf16.msra.mxu0 0
    %1808 = vmatprep.subr.bf16.mxu0 0
    %1809 = vmatpush2.bf16.msra.mxu0 0
    %1810 = vmatprep.subr.bf16.mxu0 0
    %1811 = vmatpush2.bf16.msra.mxu0 0
    %1812 = vmatprep.subr.bf16.mxu0 0
    %1813 = vmatpush2.bf16.msra.mxu0 0
    %1814 = vmatprep.subr.bf16.mxu0 0
    %1815 = vmatpush2.bf16.msra.mxu0 0
    %1816 = vmatprep.subr.bf16.mxu0 0
    %1817 = vmatpush2.bf16.msra.mxu0 0
    %1818 = vmatprep.subr.bf16.mxu0 0
    %1819 = vmatpush2.bf16.msra.mxu0 0
    %1820 = vmatprep.subr.bf16.mxu0 0
    %1821 = vmatpush2.bf16.msra.mxu0 0
    %1822 = vmatprep.mubr.bf16.mxu0 0
    %1823 = vmatmul.mubr.bf16.gmra.mxu0 %v1783
    %v1824 = vpop.f32.mrf.mxu0
    %v1825 = vadd.f32 0.0, %v1824
    %v1826 = vpop.f32.mrf.mxu0
    %v1827 = vpop.f32.mrf.mxu0
    %v1828 = vpop.f32.mrf.mxu0
    %1829 = vdwg.mxu0
    %v1830 = vadd.f32 %v1789, %v1825
    %v1831 = vxor.u32 %v1830, 2147483648
    %v1832 = vmul.f32 %v1831, 1.442695
    %v1833 = vpow.pop %v1832
    %v1834 = vadd.f32 %v1833, 1.0
    %v1835 = vrcp.pop %v1834
    %v1836 = vmul.f32 1.0, %v1835
    %v1837 = vmul.f32 %v1786, %v201
    %v1838 = vadd.f32 %v1837, %v209
    %1839 = vmatprep.subr.bf16.mxu0 0
    %1840 = vmatpush1.bf16.msra.mxu0 %v267
    %1841 = vmatprep.subr.bf16.mxu0 0
    %1842 = vmatpush1.bf16.msra.mxu0 %v266
    %1843 = vmatprep.subr.bf16.mxu0 0
    %1844 = vmatpush1.bf16.msra.mxu0 %v265
    %1845 = vmatprep.subr.bf16.mxu0 0
    %1846 = vmatpush1.bf16.msra.mxu0 %v264
    %1847 = vmatprep.subr.bf16.mxu0 0
    %1848 = vmatpush1.bf16.msra.mxu0 %v263
    %1849 = vmatprep.subr.bf16.mxu0 0
    %1850 = vmatpush1.bf16.msra.mxu0 %v262
    %1851 = vmatprep.subr.bf16.mxu0 0
    %1852 = vmatpush1.bf16.msra.mxu0 %v261
    %1853 = vmatprep.subr.bf16.mxu0 0
    %1854 = vmatpush1.bf16.msra.mxu0 %v260
    %1855 = vmatprep.subr.bf16.mxu0 0
    %1856 = vmatpush2.bf16.msra.mxu0 0
    %1857 = vmatprep.subr.bf16.mxu0 0
    %1858 = vmatpush2.bf16.msra.mxu0 0
    %1859 = vmatprep.subr.bf16.mxu0 0
    %1860 = vmatpush2.bf16.msra.mxu0 0
    %1861 = vmatprep.subr.bf16.mxu0 0
    %1862 = vmatpush2.bf16.msra.mxu0 0
    %1863 = vmatprep.subr.bf16.mxu0 0
    %1864 = vmatpush2.bf16.msra.mxu0 0
    %1865 = vmatprep.subr.bf16.mxu0 0
    %1866 = vmatpush2.bf16.msra.mxu0 0
    %1867 = vmatprep.subr.bf16.mxu0 0
    %1868 = vmatpush2.bf16.msra.mxu0 0
    %1869 = vmatprep.subr.bf16.mxu0 0
    %1870 = vmatpush2.bf16.msra.mxu0 0
    %1871 = vmatprep.mubr.bf16.mxu0 0
    %1872 = vmatmul.mubr.bf16.gmra.mxu0 %v1783
    %v1873 = vpop.f32.mrf.mxu0
    %v1874 = vadd.f32 0.0, %v1873
    %v1875 = vpop.f32.mrf.mxu0
    %v1876 = vpop.f32.mrf.mxu0
    %v1877 = vpop.f32.mrf.mxu0
    %1878 = vdwg.mxu0
    %v1879 = vadd.f32 %v1838, %v1874
    %v1880 = vxor.u32 %v1879, 2147483648
    %v1881 = vmul.f32 %v1880, 1.442695
    %v1882 = vpow.pop %v1881
    %v1883 = vadd.f32 %v1882, 1.0
    %v1884 = vrcp.pop %v1883
    %v1885 = vmul.f32 1.0, %v1884
    %v1886 = vmul.f32 %v1786, %v328
    %v1887 = vadd.f32 %v1886, %v336
    %1888 = vmatprep.subr.bf16.mxu0 0
    %1889 = vmatpush1.bf16.msra.mxu0 %v394
    %1890 = vmatprep.subr.bf16.mxu0 0
    %1891 = vmatpush1.bf16.msra.mxu0 %v393
    %1892 = vmatprep.subr.bf16.mxu0 0
    %1893 = vmatpush1.bf16.msra.mxu0 %v392
    %1894 = vmatprep.subr.bf16.mxu0 0
    %1895 = vmatpush1.bf16.msra.mxu0 %v391
    %1896 = vmatprep.subr.bf16.mxu0 0
    %1897 = vmatpush1.bf16.msra.mxu0 %v390
    %1898 = vmatprep.subr.bf16.mxu0 0
    %1899 = vmatpush1.bf16.msra.mxu0 %v389
    %1900 = vmatprep.subr.bf16.mxu0 0
    %1901 = vmatpush1.bf16.msra.mxu0 %v388
    %1902 = vmatprep.subr.bf16.mxu0 0
    %1903 = vmatpush1.bf16.msra.mxu0 %v387
    %1904 = vmatprep.subr.bf16.mxu0 0
    %1905 = vmatpush2.bf16.msra.mxu0 0
    %1906 = vmatprep.subr.bf16.mxu0 0
    %1907 = vmatpush2.bf16.msra.mxu0 0
    %1908 = vmatprep.subr.bf16.mxu0 0
    %1909 = vmatpush2.bf16.msra.mxu0 0
    %1910 = vmatprep.subr.bf16.mxu0 0
    %1911 = vmatpush2.bf16.msra.mxu0 0
    %1912 = vmatprep.subr.bf16.mxu0 0
    %1913 = vmatpush2.bf16.msra.mxu0 0
    %1914 = vmatprep.subr.bf16.mxu0 0
    %1915 = vmatpush2.bf16.msra.mxu0 0
    %1916 = vmatprep.subr.bf16.mxu0 0
    %1917 = vmatpush2.bf16.msra.mxu0 0
    %1918 = vmatprep.subr.bf16.mxu0 0
    %1919 = vmatpush2.bf16.msra.mxu0 0
    %1920 = vmatprep.mubr.bf16.mxu0 0
    %1921 = vmatmul.mubr.bf16.gmra.mxu0 %v1783
    %v1922 = vpop.f32.mrf.mxu0
    %v1923 = vadd.f32 0.0, %v1922
    %v1924 = vpop.f32.mrf.mxu0
    %v1925 = vpop.f32.mrf.mxu0
    %v1926 = vpop.f32.mrf.mxu0
    %1927 = vdwg.mxu0
    %v1928 = vadd.f32 %v1887, %v1923
    %v1929 = vtanh.pop %v1928
    %v1930 = vmul.f32 %v1786, %v450
    %v1931 = vadd.f32 %v1930, %v458
    %1932 = vmatprep.subr.bf16.mxu0 0
    %1933 = vmatpush1.bf16.msra.mxu0 %v516
    %1934 = vmatprep.subr.bf16.mxu0 0
    %1935 = vmatpush1.bf16.msra.mxu0 %v515
    %1936 = vmatprep.subr.bf16.mxu0 0
    %1937 = vmatpush1.bf16.msra.mxu0 %v514
    %1938 = vmatprep.subr.bf16.mxu0 0
    %1939 = vmatpush1.bf16.msra.mxu0 %v513
    %1940 = vmatprep.subr.bf16.mxu0 0
    %1941 = vmatpush1.bf16.msra.mxu0 %v512
    %1942 = vmatprep.subr.bf16.mxu0 0
    %1943 = vmatpush1.bf16.msra.mxu0 %v511
    %1944 = vmatprep.subr.bf16.mxu0 0
    %1945 = vmatpush1.bf16.msra.mxu0 %v510
    %1946 = vmatprep.subr.bf16.mxu0 0
    %1947 = vmatpush1.bf16.msra.mxu0 %v509
    %1948 = vmatprep.subr.bf16.mxu0 0
    %1949 = vmatpush2.bf16.msra.mxu0 0
    %1950 = vmatprep.subr.bf16.mxu0 0
    %1951 = vmatpush2.bf16.msra.mxu0 0
    %1952 = vmatprep.subr.bf16.mxu0 0
    %1953 = vmatpush2.bf16.msra.mxu0 0
    %1954 = vmatprep.subr.bf16.mxu0 0
    %1955 = vmatpush2.bf16.msra.mxu0 0
    %1956 = vmatprep.subr.bf16.mxu0 0
    %1957 = vmatpush2.bf16.msra.mxu0 0
    %1958 = vmatprep.subr.bf16.mxu0 0
    %1959 = vmatpush2.bf16.msra.mxu0 0
    %1960 = vmatprep.subr.bf16.mxu0 0
    %1961 = vmatpush2.bf16.msra.mxu0 0
    %1962 = vmatprep.subr.bf16.mxu0 0
    %1963 = vmatpush2.bf16.msra.mxu0 0
    %1964 = vmatprep.mubr.bf16.mxu0 0
    %1965 = vmatmul.mubr.bf16.gmra.mxu0 %v1783
    %v1966 = vpop.f32.mrf.mxu0
    %v1967 = vadd.f32 0.0, %v1966
    %v1968 = vpop.f32.mrf.mxu0
    %v1969 = vpop.f32.mrf.mxu0
    %v1970 = vpop.f32.mrf.mxu0
    %1971 = vdwg.mxu0
    %v1972 = vadd.f32 %v1931, %v1967
    %v1973 = vxor.u32 %v1972, 2147483648
    %v1974 = vmul.f32 %v1973, 1.442695
    %v1975 = vpow.pop %v1974
    %v1976 = vadd.f32 %v1975, 1.0
    %v1977 = vrcp.pop %v1976
    %v1978 = vmul.f32 1.0, %v1977
    %v1979 = vmul.f32 %v1885, %v1780
    %v1980 = vmul.f32 %v1836, %v1929
    %v1981 = vadd.f32 %v1979, %v1980
    %v1982 = vtanh.pop %v1981
    %v1983 = vmul.f32 %v1978, %v1982
    %v1984 = vld [vmem:[%s4] sm:$0x1]
    %v1986 = vlaneseq
    %v1987 = vshrl.u32 %v1986, 7
    %v1988 = vsub.s32 0, %v1987
    %v1989 = vrot.slane %v1984, %v1988
    %v1991 = vmul.f32 %v1983, %v1989
    %1992 = vadd.xlane.f32.xlu0 %v1991
    %v1993 = vpop.xlane.xlu0 %1992
    %s1994 = sld [smem:[#allocation2]]
    %v1995 = vstv %s1994
    %v1996 = vadd.f32 %v1993, %v1995
    %1997 = vst [vmem:[#allocation9] sm:$0xff] %v1996
    // Predicated region
    $region38: #{tpu_custom_call.1} parent=1 // pred_check
      _
    $region39: #{tpu_custom_call.1} parent=1 // pred_check_branch
      %1999 = sbr.rel (0) target = $region41
    $region40: #{tpu_custom_call.1} parent=1 // pred_region
      %s2001 = ssub.s32 128, 128
      %2002 = vsyncadd [#allocation5], %s2001
      %s2004 = sshll.u32 [#allocation9], 4
      %s2005 = int_to_ptr.vmem [resolvable:$true] %s2004
      %2007 = dma.vmem_to_hbm [thread:$0]  %s2005, 128, %s6, [#allocation5]
    $region41: #{tpu_custom_call.1} parent=1 // pred_fallthru
      _
    // Predicated region
    $region42: #{tpu_custom_call.1} parent=1 // pred_check
      _
    $region43: #{tpu_custom_call.1} parent=1 // pred_check_branch
      %2009 = sbr.rel (0) target = $region45
    $region44: #{tpu_custom_call.1} parent=1 // pred_region
      %2010 = dma.done [#allocation5], 128
    $region45: #{tpu_custom_call.1} parent=1 // pred_fallthru
      _
    %2011 = vsyncpa [#allocation4], 1
    %2012 = vsyncpa [#allocation7], 1
    %2013 = vsyncpa [#allocation5], 1

</llo_original>
